<compile_context>
chip_gen: v7x
topology: tpu7x:2x2x1
jax: 0.10.0
libtpu: 0.0.40
codegen_flags: <defaults>
</compile_context>

<pallas_src>
import functools
import numpy as np
import jax
import jax.numpy as jnp
from jax.experimental import pallas as pl
from jax.experimental.pallas import tpu as pltpu


_VMEM_LIMIT = 32 * 1024 * 1024  # conservative; fits v5e/v6e/v7x scoped budgets


def _round_up(x, m):
    return (x + m - 1) // m * m


# ----------------------------------------------------------------------------
# Pallas kernels
# ----------------------------------------------------------------------------

def _conv_flat_kernel(x_ref, w_ref, s_ref, b_ref, o_ref, *, shifts, out_rows,
                      relu):
    """Fused implicit-im2col conv.

    o = relu?( (sum_q x[shift_q : shift_q+M, :] @ w[q]) * s + b )

    x_ref : (R, K)        bf16   row-flattened, spatially padded activation
    w_ref : (taps, K, tn) bf16   one (K, tn) weight slab per kernel tap
    s/b   : (1, tn)       f32    folded-BN scale / bias per output channel
    o_ref : (M, tn)              M = out_rows "wide" output rows
    """
    acc = None
    for q, sh in enumerate(shifts):
        lhs = x_ref[pl.ds(sh, out_rows), :]
        part = jnp.dot(lhs, w_ref[q], preferred_element_type=jnp.float32)
        acc = part if acc is None else acc + part
    acc = acc * s_ref[...] + b_ref[...]
    if relu:
        acc = jnp.maximum(acc, 0.0)
    o_ref[...] = acc.astype(o_ref.dtype)


def _pool_flat_kernel(x_ref, o_ref, *, shifts, out_rows):
    """Single-pass max pool: o[m] = max_q x[m + shift_q]."""
    r = x_ref[pl.ds(shifts[0], out_rows), :]
    for sh in shifts[1:]:
        r = jnp.maximum(r, x_ref[pl.ds(sh, out_rows), :])
    o_ref[...] = r


def _lerp_axis1_kernel(x_ref, o_ref, *, i0, i1, fr):
    """2-tap bilinear lerp along axis 1 (pure VPU; indices/weights static)."""
    for a in range(x_ref.shape[0]):
        for s in range(len(i0)):
            lo = x_ref[a, i0[s]].astype(jnp.float32)
            hi = x_ref[a, i1[s]].astype(jnp.float32)
            o_ref[a, s] = ((1.0 - fr[s]) * lo + fr[s] * hi).astype(o_ref.dtype)


# ----------------------------------------------------------------------------
# Kernel wrappers
# ----------------------------------------------------------------------------

def conv_flat(xf, w, scale, bias, shifts, out_rows, relu, out_dtype):
    """xf: (R, K) bf16; w: (taps, K, Np) bf16; scale/bias: (1, Np) f32."""
    R, K = xf.shape
    taps, _, np_ = w.shape
    tn = 256 if np_ % 256 == 0 else 128          # output-channel tile
    grid = (np_ // tn,)
    kernel = functools.partial(_conv_flat_kernel, shifts=tuple(shifts),
                               out_rows=out_rows, relu=relu)
    return pl.pallas_call(
        kernel,
        out_shape=jax.ShapeDtypeStruct((out_rows, np_), out_dtype),
        grid=grid,
        in_specs=[
            pl.BlockSpec((R, K), lambda j: (0, 0)),          # resident input
            pl.BlockSpec((taps, K, tn), lambda j: (0, 0, j)),
            pl.BlockSpec((1, tn), lambda j: (0, j)),
            pl.BlockSpec((1, tn), lambda j: (0, j)),
        ],
        out_specs=pl.BlockSpec((out_rows, tn), lambda j: (0, j)),
        compiler_params=pltpu.CompilerParams(
            dimension_semantics=("parallel",),
            vmem_limit_bytes=_VMEM_LIMIT),
    )(xf, w, scale, bias)


def conv_apply(x, p, pad=0, relu=True, out_dtype=jnp.bfloat16):
    """Stride-1 Conv(+folded BN)+ReLU via the fused implicit-im2col kernel."""
    N, H, W, C = x.shape
    k, cout = p['k'], p['cout']
    Ho, Wo = H + 2 * pad - k + 1, W + 2 * pad - k + 1
    Hp, Wp = H + 2 * pad, W + 2 * pad
    xq = jnp.pad(x, ((0, 0), (pad, pad), (pad, pad), (0, 0))) if pad else x
    xf = xq.reshape(N * Hp * Wp, C)
    extra = (k - 1) * Wp + (k - 1)
    if extra:
        xf = jnp.pad(xf, ((0, extra), (0, 0)))
    shifts = tuple(i * Wp + j for i in range(k) for j in range(k))
    out = conv_flat(xf, p['w'], p['scale'], p['bias'], shifts, N * Hp * Wp,
                    relu, out_dtype)
    out = out.reshape(N, Hp, Wp, out.shape[-1])
    return out[:, :Ho, :Wo, :cout]


def _im2col(x, kh, kw, stride, pad):
    """x: (N,H,W,C) NHWC -> patches (N*Ho*Wo, kh*kw*C), Ho, Wo."""
    N, H, W, C = x.shape
    Ho = (H + 2 * pad - kh) // stride + 1
    Wo = (W + 2 * pad - kw) // stride + 1
    xp = jnp.pad(x, ((0, 0), (pad, pad), (pad, pad), (0, 0)))
    cols = []
    for i in range(kh):
        for j in range(kw):
            cols.append(xp[:, i:i + stride * Ho:stride,
                           j:j + stride * Wo:stride, :])
    patches = jnp.stack(cols, axis=3)          # (N, Ho, Wo, kh*kw, C)
    return patches.reshape(N * Ho * Wo, kh * kw * C), Ho, Wo


def conv_im2col_apply(x, p, stride, pad, relu=True, out_dtype=jnp.bfloat16):
    """Strided conv (only the 7x7 s2 stem conv1, 3 input channels)."""
    k, cout = p['k'], p['cout']
    patches, Ho, Wo = _im2col(x, k, k, stride, pad)       # bf16, small
    out = conv_flat(patches, p['w'], p['scale'], p['bias'], (0,),
                    patches.shape[0], relu, out_dtype)
    return out.reshape(x.shape[0], Ho, Wo, -1)[..., :cout]


def _pool_out_size(size, k, stride, pad, ceil_mode):
    if ceil_mode:
        o = -(-(size + 2 * pad - k) // stride) + 1
        if (o - 1) * stride >= size + pad:   # PyTorch ceil_mode caveat
            o -= 1
    else:
        o = (size + 2 * pad - k) // stride + 1
    return o


def maxpool2d(x, k, stride, pad=0, ceil_mode=True):
    """PyTorch-semantics max pool (ceil_mode, -inf padding), NHWC, bf16."""
    N, H, W, C = x.shape
    Ho = _pool_out_size(H, k, stride, pad, ceil_mode)
    Wo = _pool_out_size(W, k, stride, pad, ceil_mode)
    pad_b = max(pad, (Ho - 1) * stride + k - H - pad)
    pad_r = max(pad, (Wo - 1) * stride + k - W - pad)
    Hp, Wp = H + pad + pad_b, W + pad + pad_r
    xp = jnp.pad(x, ((0, 0), (pad, pad_b), (pad, pad_r), (0, 0)),
                 constant_values=-np.inf)
    xf = xp.reshape(N * Hp * Wp, C)
    extra = (k - 1) * Wp + (k - 1)
    xf = jnp.pad(xf, ((0, extra), (0, 0)), constant_values=-np.inf)
    shifts = tuple(i * Wp + j for i in range(k) for j in range(k))
    out_rows = N * Hp * Wp
    out = pl.pallas_call(
        functools.partial(_pool_flat_kernel, shifts=shifts, out_rows=out_rows),
        out_shape=jax.ShapeDtypeStruct((out_rows, C), x.dtype),
        grid=(1,),
        in_specs=[pl.BlockSpec((xf.shape[0], C), lambda i: (0, 0))],
        out_specs=pl.BlockSpec((out_rows, C), lambda i: (0, 0)),
        compiler_params=pltpu.CompilerParams(vmem_limit_bytes=_VMEM_LIMIT),
    )(xf)
    out = out.reshape(N, Hp, Wp, C)
    return out[:, ::stride, ::stride, :][:, :Ho, :Wo, :]


def _bilinear_idx(out_size, in_size):
    """Indices/weights matching nn.Upsample(bilinear, align_corners=False)."""
    scale = in_size / out_size
    i0, i1, fr = [], [], []
    for o in range(out_size):
        src = max((o + 0.5) * scale - 0.5, 0.0)
        lo = min(int(np.floor(src)), in_size - 1)
        hi = min(lo + 1, in_size - 1)
        i0.append(lo)
        i1.append(hi)
        fr.append(float(src - lo))
    return i0, i1, fr


def _lerp_axis1(x, out_size):
    A, S_in, B, C = x.shape
    i0, i1, fr = _bilinear_idx(out_size, S_in)
    return pl.pallas_call(
        functools.partial(_lerp_axis1_kernel, i0=i0, i1=i1, fr=fr),
        out_shape=jax.ShapeDtypeStruct((A, out_size, B, C), x.dtype),
        grid=(1,),
        in_specs=[pl.BlockSpec((A, S_in, B, C), lambda i: (0, 0, 0, 0))],
        out_specs=pl.BlockSpec((A, out_size, B, C), lambda i: (0, 0, 0, 0)),
        compiler_params=pltpu.CompilerParams(vmem_limit_bytes=_VMEM_LIMIT),
    )(x)


def upsample_bilinear(x, H_out, W_out):
    """x: (N, h, w, C) f32 -> (N, H_out, W_out, C), two VPU lerp kernels."""
    t = jnp.transpose(x, (0, 2, 1, 3))      # (N, w, h, C)   (tiny tensor)
    t = _lerp_axis1(t, W_out)               # (N, W_out, h, C)
    t = jnp.transpose(t, (0, 2, 1, 3))      # (N, h, W_out, C)
    t = _lerp_axis1(t, H_out)               # (N, H_out, W_out, C)
    return t


# ----------------------------------------------------------------------------
# Parameters (synthetic, deterministic), pre-padded to kernel layout at init
# ----------------------------------------------------------------------------

def make_conv_params(w_hwio, scale, bias, *, k, im2col=False):
    kh, kw, cin, cout = w_hwio.shape
    np_ = _round_up(cout, 128)
    w = jnp.pad(w_hwio.astype(jnp.float32),
                ((0, 0), (0, 0), (0, 0), (0, np_ - cout)))
    if im2col:
        wk = w.reshape(1, kh * kw * cin, np_).astype(jnp.bfloat16)
    else:
        wk = w.reshape(kh * kw, cin, np_).astype(jnp.bfloat16)
    s = jnp.pad(scale.astype(jnp.float32), (0, np_ - cout)).reshape(1, np_)
    b = jnp.pad(bias.astype(jnp.float32), (0, np_ - cout)).reshape(1, np_)
    return {'w': wk, 'scale': s, 'bias': b, 'k': k, 'cout': cout}


def _raw_conv_bn(key, cin, cout, k):
    k1, k2, k3, k4, k5 = jax.random.split(key, 5)
    w = jax.random.normal(k1, (k, k, cin, cout), jnp.float32) / np.sqrt(k * k * cin)
    gamma = 1.0 + 0.1 * jax.random.normal(k2, (cout,), jnp.float32)
    beta = 0.1 * jax.random.normal(k3, (cout,), jnp.float32)
    rmean = 0.1 * jax.random.normal(k4, (cout,), jnp.float32)
    rvar = 1.0 + 0.5 * jax.random.uniform(k5, (cout,), jnp.float32)
    eps = 1e-3  # torchvision BasicConv2d BatchNorm eps
    scale = gamma / jnp.sqrt(rvar + eps)
    bias = beta - rmean * scale
    return w, scale, bias


def init_inception(key, cin, ch1, ch3r, ch3, ch5r, ch5, pp):
    ks = jax.random.split(key, 6)
    w1, s1, b1 = _raw_conv_bn(ks[0], cin, ch1, 1)
    w2a, s2a, b2a = _raw_conv_bn(ks[1], cin, ch3r, 1)
    w3a, s3a, b3a = _raw_conv_bn(ks[3], cin, ch5r, 1)
    # fuse the three 1x1 branches that read the same input into one matmul
    fused = make_conv_params(jnp.concatenate([w1, w2a, w3a], axis=3),
                             jnp.concatenate([s1, s2a, s3a]),
                             jnp.concatenate([b1, b2a, b3a]), k=1)
    fused['splits'] = (ch1, ch3r, ch5r)
    return {
        'fused1x1': fused,
        # torchvision GoogLeNet uses 3x3 for the "5x5" branch (documented bug)
        'b2b': make_conv_params(*_raw_conv_bn(ks[2], ch3r, ch3, 3), k=3),
        'b3b': make_conv_params(*_raw_conv_bn(ks[4], ch5r, ch5, 3), k=3),
        'b4': make_conv_params(*_raw_conv_bn(ks[5], cin, pp, 1), k=1),
    }


def init_params(key, num_classes=21):
    keys = jax.random.split(key, 12)
    p = {
        'conv1': make_conv_params(*_raw_conv_bn(keys[0], 3, 64, 7), k=7,
                                  im2col=True),
        'conv2': make_conv_params(*_raw_conv_bn(keys[1], 64, 64, 1), k=1),
        'conv3': make_conv_params(*_raw_conv_bn(keys[2], 64, 192, 3), k=3),
        'i3a': init_inception(keys[3], 192, 64, 96, 128, 16, 32, 32),
        'i3b': init_inception(keys[4], 256, 128, 128, 192, 32, 96, 64),
        'i4a': init_inception(keys[5], 480, 192, 96, 208, 16, 48, 64),
        'i4b': init_inception(keys[6], 512, 160, 112, 224, 24, 64, 64),
        'i4c': init_inception(keys[7], 512, 128, 128, 256, 24, 64, 64),
        'i4d': init_inception(keys[8], 512, 112, 144, 288, 32, 64, 64),
        'i4e': init_inception(keys[9], 528, 256, 160, 320, 32, 128, 128),
        'i5a': init_inception(keys[10], 832, 256, 160, 320, 32, 128, 128),
        'i5b': init_inception(keys[11], 832, 384, 192, 384, 48, 128, 128),
        # score conv: zero weight and zero bias, exactly like the PyTorch init
        'score': make_conv_params(jnp.zeros((1, 1, 1024, num_classes), jnp.float32),
                                  jnp.ones((num_classes,), jnp.float32),
                                  jnp.zeros((num_classes,), jnp.float32), k=1),
    }
    return p


# ----------------------------------------------------------------------------
# Model
# ----------------------------------------------------------------------------

def inception_apply(x, p):
    y1, y2a, y3a = _inception_1x1(x, p['fused1x1'])
    b2 = conv_apply(y2a, p['b2b'], pad=1)
    b3 = conv_apply(y3a, p['b3b'], pad=1)
    b4 = conv_apply(maxpool2d(x, 3, 1, pad=1, ceil_mode=True), p['b4'])
    return jnp.concatenate([y1, b2, b3, b4], axis=-1)


def _inception_1x1(x, p):
    out = conv_apply(x, p, pad=0, relu=True)
    c1, c2, _ = p['splits']
    return out[..., :c1], out[..., c1:c1 + c2], out[..., c1 + c2:]


def fcn_googlenet_forward(params, x_nchw):
    N, C, H, W = x_nchw.shape
    x = jnp.transpose(x_nchw, (0, 2, 3, 1)).astype(jnp.bfloat16)  # -> NHWC

    # entry block: conv1 / maxpool1 / conv2 / conv3 / maxpool2
    out = conv_im2col_apply(x, params['conv1'], stride=2, pad=3)
    out = maxpool2d(out, 3, 2)
    out = conv_apply(out, params['conv2'])
    out = conv_apply(out, params['conv3'], pad=1)
    out = maxpool2d(out, 3, 2)

    # inception3 + maxpool3
    out = inception_apply(out, params['i3a'])
    out = inception_apply(out, params['i3b'])
    out = maxpool2d(out, 3, 2)

    # inception4 + maxpool4
    for name in ('i4a', 'i4b', 'i4c', 'i4d', 'i4e'):
        out = inception_apply(out, params[name])
    out = maxpool2d(out, 2, 2)

    # inception5
    out = inception_apply(out, params['i5a'])
    out = inception_apply(out, params['i5b'])

    # Dropout2d(p=0.5): eval-mode identity.
    # TODO(synk): training-mode Dropout2d randomness is not reproduced.

    # score: 1x1 conv (1024 -> num_classes) with bias, no activation, f32 out
    out = conv_apply(out, params['score'], relu=False, out_dtype=jnp.float32)

    # bilinear upsample back to input spatial size (align_corners=False)
    out = upsample_bilinear(out, H, W)
    return jnp.transpose(out, (0, 3, 1, 2))   # back to NCHW


# ----------------------------------------------------------------------------
# Self-checks (non-vacuous numerics for the fused conv / pool kernels)
# ----------------------------------------------------------------------------

def _self_check():
    key = jax.random.PRNGKey(7)
    k1, k2, k3, k4 = jax.random.split(key, 4)

    # fused conv (3x3, stride 1, pad 1) vs lax.conv reference (same bf16 inputs)
    x = jax.random.normal(k1, (2, 5, 7, 16), jnp.float32).astype(jnp.bfloat16)
    w = jax.random.normal(k2, (3, 3, 16, 24), jnp.float32) / np.sqrt(9 * 16)
    scale = 1.0 + 0.1 * jax.random.normal(k3, (24,), jnp.float32)
    bias = 0.1 * jax.random.normal(k4, (24,), jnp.float32)
    p = make_conv_params(w, scale, bias, k=3)
    mine = conv_apply(x, p, pad=1, relu=True).astype(jnp.float32)
    wb = w.astype(jnp.bfloat16).astype(jnp.float32)
    ref = jax.lax.conv_general_dilated(
        x.astype(jnp.float32), wb, (1, 1), ((1, 1), (1, 1)),
        dimension_numbers=('NHWC', 'HWIO', 'NHWC'),
        precision=jax.lax.Precision.HIGHEST)
    ref = jnp.maximum(ref * scale + bias, 0.0)
    err = float(jnp.max(jnp.abs(mine - ref)))
    assert err < 5e-2, f"conv self-check failed, max err {err}"

    # maxpool (3x3, stride 2, ceil_mode) vs explicit strided-window maximum
    xp_ = jax.random.normal(k1, (2, 8, 10, 24), jnp.float32).astype(jnp.bfloat16)
    mine_p = maxpool2d(xp_, 3, 2, pad=0, ceil_mode=True).astype(jnp.float32)
    Ho = _pool_out_size(8, 3, 2, 0, True)
    Wo = _pool_out_size(10, 3, 2, 0, True)
    pb = max(0, (Ho - 1) * 2 + 3 - 8)
    pr = max(0, (Wo - 1) * 2 + 3 - 10)
    xr = jnp.pad(xp_.astype(jnp.float32), ((0, 0), (0, pb), (0, pr), (0, 0)),
                 constant_values=-np.inf)
    ref_p = None
    for i in range(3):
        for j in range(3):
            wnd = xr[:, i:i + 2 * Ho:2, j:j + 2 * Wo:2, :]
            ref_p = wnd if ref_p is None else jnp.maximum(ref_p, wnd)
    assert bool(jnp.all(mine_p == ref_p)), "maxpool self-check failed"


# ----------------------------------------------------------------------------
# Main
# ----------------------------------------------------------------------------

if __name__ == "__main__":
    _self_check()

    num_classes = 21
    key = jax.random.PRNGKey(0)
    kp, kx = jax.random.split(key)

    params = init_params(kp, num_classes=num_classes)
    # Small input: batch=2, 3 channels, 32x32 (divisible by total stride 32).
    x = jax.random.normal(kx, (2, 3, 32, 32), jnp.float32)

    # params are closed over (static metadata stays Python-side).
    fwd = jax.jit(lambda inp: fcn_googlenet_forward(params, inp))
    out = jax.block_until_ready(fwd(x))

    assert out.shape == (2, num_classes, 32, 32), out.shape
    assert bool(jnp.all(jnp.isfinite(out)))
    # score conv is zero-initialized, so the upsampled logits are exactly zero
    assert float(jnp.max(jnp.abs(out))) == 0.0

    print("KERNEL_OK")
</pallas_src>

<mosaic_0001>
module attributes {stable_mosaic.version = 11 : i64} {
  func.func @_conv_flat_kernel(%arg0: i32, %arg1: memref<146x16xbf16, #tpu.memory_space<vmem>>, %arg2: memref<9x16x128xbf16, #tpu.memory_space<vmem>>, %arg3: memref<1x128xf32, #tpu.memory_space<vmem>>, %arg4: memref<1x128xf32, #tpu.memory_space<vmem>>, %arg5: memref<126x128xbf16, #tpu.memory_space<vmem>>) attributes {dimension_semantics = [#tpu.dimension_semantics<parallel>], iteration_bounds = array<i64: 1>, scalar_prefetch = 0 : i64, scratch_operands = 0 : i64, tpu.core_type = #tpu.core_type<tc>, window_params = [{pipeline_mode = #tpu.pipeline_mode<synchronous>, transform_indices = @transform_0, window_bounds = array<i64: 146, 16>}, {transform_indices = @transform_1, window_bounds = array<i64: 9, 16, 128>}, {transform_indices = @transform_2, window_bounds = array<i64: 1, 128>}, {transform_indices = @transform_3, window_bounds = array<i64: 1, 128>}, {transform_indices = @transform_4, window_bounds = array<i64: 126, 128>}]} {
    %c0 = arith.constant 0 : index
    %c0_0 = arith.constant 0 : index
    %0 = vector.load %arg1[%c0, %c0_0] : memref<146x16xbf16, #tpu.memory_space<vmem>>, vector<126x16xbf16>
    %c0_1 = arith.constant 0 : index
    %c0_2 = arith.constant 0 : index
    %c0_3 = arith.constant 0 : index
    %1 = vector.load %arg2[%c0_1, %c0_2, %c0_3] : memref<9x16x128xbf16, #tpu.memory_space<vmem>>, vector<1x16x128xbf16>
    %2 = vector.shape_cast %1 : vector<1x16x128xbf16> to vector<16x128xbf16>
    %cst = arith.constant dense<0.000000e+00> : vector<126x128xf32>
    %3 = tpu.matmul %0, %2, %cst {dimension_numbers = #tpu.dot_dimension_numbers<[1], [0], [0], [1], [0, 0, 1, 1], [], []>} : vector<126x16xbf16>, vector<16x128xbf16>, vector<126x128xf32> -> vector<126x128xf32>
    %c1 = arith.constant 1 : index
    %c0_4 = arith.constant 0 : index
    %4 = vector.load %arg1[%c1, %c0_4] : memref<146x16xbf16, #tpu.memory_space<vmem>>, vector<126x16xbf16>
    %c1_5 = arith.constant 1 : index
    %c0_6 = arith.constant 0 : index
    %c0_7 = arith.constant 0 : index
    %5 = vector.load %arg2[%c1_5, %c0_6, %c0_7] : memref<9x16x128xbf16, #tpu.memory_space<vmem>>, vector<1x16x128xbf16>
    %6 = vector.shape_cast %5 : vector<1x16x128xbf16> to vector<16x128xbf16>
    %cst_8 = arith.constant dense<0.000000e+00> : vector<126x128xf32>
    %7 = tpu.matmul %4, %6, %cst_8 {dimension_numbers = #tpu.dot_dimension_numbers<[1], [0], [0], [1], [0, 0, 1, 1], [], []>} : vector<126x16xbf16>, vector<16x128xbf16>, vector<126x128xf32> -> vector<126x128xf32>
    %8 = arith.addf %3, %7 : vector<126x128xf32>
    %c2 = arith.constant 2 : index
    %c0_9 = arith.constant 0 : index
    %9 = vector.load %arg1[%c2, %c0_9] : memref<146x16xbf16, #tpu.memory_space<vmem>>, vector<126x16xbf16>
    %c2_10 = arith.constant 2 : index
    %c0_11 = arith.constant 0 : index
    %c0_12 = arith.constant 0 : index
    %10 = vector.load %arg2[%c2_10, %c0_11, %c0_12] : memref<9x16x128xbf16, #tpu.memory_space<vmem>>, vector<1x16x128xbf16>
    %11 = vector.shape_cast %10 : vector<1x16x128xbf16> to vector<16x128xbf16>
    %cst_13 = arith.constant dense<0.000000e+00> : vector<126x128xf32>
    %12 = tpu.matmul %9, %11, %cst_13 {dimension_numbers = #tpu.dot_dimension_numbers<[1], [0], [0], [1], [0, 0, 1, 1], [], []>} : vector<126x16xbf16>, vector<16x128xbf16>, vector<126x128xf32> -> vector<126x128xf32>
    %13 = arith.addf %8, %12 : vector<126x128xf32>
    %c9 = arith.constant 9 : index
    %c0_14 = arith.constant 0 : index
    %14 = vector.load %arg1[%c9, %c0_14] : memref<146x16xbf16, #tpu.memory_space<vmem>>, vector<126x16xbf16>
    %c3 = arith.constant 3 : index
    %c0_15 = arith.constant 0 : index
    %c0_16 = arith.constant 0 : index
    %15 = vector.load %arg2[%c3, %c0_15, %c0_16] : memref<9x16x128xbf16, #tpu.memory_space<vmem>>, vector<1x16x128xbf16>
    %16 = vector.shape_cast %15 : vector<1x16x128xbf16> to vector<16x128xbf16>
    %cst_17 = arith.constant dense<0.000000e+00> : vector<126x128xf32>
    %17 = tpu.matmul %14, %16, %cst_17 {dimension_numbers = #tpu.dot_dimension_numbers<[1], [0], [0], [1], [0, 0, 1, 1], [], []>} : vector<126x16xbf16>, vector<16x128xbf16>, vector<126x128xf32> -> vector<126x128xf32>
    %18 = arith.addf %13, %17 : vector<126x128xf32>
    %c10 = arith.constant 10 : index
    %c0_18 = arith.constant 0 : index
    %19 = vector.load %arg1[%c10, %c0_18] : memref<146x16xbf16, #tpu.memory_space<vmem>>, vector<126x16xbf16>
    %c4 = arith.constant 4 : index
    %c0_19 = arith.constant 0 : index
    %c0_20 = arith.constant 0 : index
    %20 = vector.load %arg2[%c4, %c0_19, %c0_20] : memref<9x16x128xbf16, #tpu.memory_space<vmem>>, vector<1x16x128xbf16>
    %21 = vector.shape_cast %20 : vector<1x16x128xbf16> to vector<16x128xbf16>
    %cst_21 = arith.constant dense<0.000000e+00> : vector<126x128xf32>
    %22 = tpu.matmul %19, %21, %cst_21 {dimension_numbers = #tpu.dot_dimension_numbers<[1], [0], [0], [1], [0, 0, 1, 1], [], []>} : vector<126x16xbf16>, vector<16x128xbf16>, vector<126x128xf32> -> vector<126x128xf32>
    %23 = arith.addf %18, %22 : vector<126x128xf32>
    %c11 = arith.constant 11 : index
    %c0_22 = arith.constant 0 : index
    %24 = vector.load %arg1[%c11, %c0_22] : memref<146x16xbf16, #tpu.memory_space<vmem>>, vector<126x16xbf16>
    %c5 = arith.constant 5 : index
    %c0_23 = arith.constant 0 : index
    %c0_24 = arith.constant 0 : index
    %25 = vector.load %arg2[%c5, %c0_23, %c0_24] : memref<9x16x128xbf16, #tpu.memory_space<vmem>>, vector<1x16x128xbf16>
    %26 = vector.shape_cast %25 : vector<1x16x128xbf16> to vector<16x128xbf16>
    %cst_25 = arith.constant dense<0.000000e+00> : vector<126x128xf32>
    %27 = tpu.matmul %24, %26, %cst_25 {dimension_numbers = #tpu.dot_dimension_numbers<[1], [0], [0], [1], [0, 0, 1, 1], [], []>} : vector<126x16xbf16>, vector<16x128xbf16>, vector<126x128xf32> -> vector<126x128xf32>
    %28 = arith.addf %23, %27 : vector<126x128xf32>
    %c18 = arith.constant 18 : index
    %c0_26 = arith.constant 0 : index
    %29 = vector.load %arg1[%c18, %c0_26] : memref<146x16xbf16, #tpu.memory_space<vmem>>, vector<126x16xbf16>
    %c6 = arith.constant 6 : index
    %c0_27 = arith.constant 0 : index
    %c0_28 = arith.constant 0 : index
    %30 = vector.load %arg2[%c6, %c0_27, %c0_28] : memref<9x16x128xbf16, #tpu.memory_space<vmem>>, vector<1x16x128xbf16>
    %31 = vector.shape_cast %30 : vector<1x16x128xbf16> to vector<16x128xbf16>
    %cst_29 = arith.constant dense<0.000000e+00> : vector<126x128xf32>
    %32 = tpu.matmul %29, %31, %cst_29 {dimension_numbers = #tpu.dot_dimension_numbers<[1], [0], [0], [1], [0, 0, 1, 1], [], []>} : vector<126x16xbf16>, vector<16x128xbf16>, vector<126x128xf32> -> vector<126x128xf32>
    %33 = arith.addf %28, %32 : vector<126x128xf32>
    %c19 = arith.constant 19 : index
    %c0_30 = arith.constant 0 : index
    %34 = vector.load %arg1[%c19, %c0_30] : memref<146x16xbf16, #tpu.memory_space<vmem>>, vector<126x16xbf16>
    %c7 = arith.constant 7 : index
    %c0_31 = arith.constant 0 : index
    %c0_32 = arith.constant 0 : index
    %35 = vector.load %arg2[%c7, %c0_31, %c0_32] : memref<9x16x128xbf16, #tpu.memory_space<vmem>>, vector<1x16x128xbf16>
    %36 = vector.shape_cast %35 : vector<1x16x128xbf16> to vector<16x128xbf16>
    %cst_33 = arith.constant dense<0.000000e+00> : vector<126x128xf32>
    %37 = tpu.matmul %34, %36, %cst_33 {dimension_numbers = #tpu.dot_dimension_numbers<[1], [0], [0], [1], [0, 0, 1, 1], [], []>} : vector<126x16xbf16>, vector<16x128xbf16>, vector<126x128xf32> -> vector<126x128xf32>
    %38 = arith.addf %33, %37 : vector<126x128xf32>
    %c20 = arith.constant 20 : index
    %c0_34 = arith.constant 0 : index
    %39 = vector.load %arg1[%c20, %c0_34] : memref<146x16xbf16, #tpu.memory_space<vmem>>, vector<126x16xbf16>
    %c8 = arith.constant 8 : index
    %c0_35 = arith.constant 0 : index
    %c0_36 = arith.constant 0 : index
    %40 = vector.load %arg2[%c8, %c0_35, %c0_36] : memref<9x16x128xbf16, #tpu.memory_space<vmem>>, vector<1x16x128xbf16>
    %41 = vector.shape_cast %40 : vector<1x16x128xbf16> to vector<16x128xbf16>
    %cst_37 = arith.constant dense<0.000000e+00> : vector<126x128xf32>
    %42 = tpu.matmul %39, %41, %cst_37 {dimension_numbers = #tpu.dot_dimension_numbers<[1], [0], [0], [1], [0, 0, 1, 1], [], []>} : vector<126x16xbf16>, vector<16x128xbf16>, vector<126x128xf32> -> vector<126x128xf32>
    %43 = arith.addf %38, %42 : vector<126x128xf32>
    %c0_38 = arith.constant 0 : index
    %c0_39 = arith.constant 0 : index
    %44 = vector.load %arg3[%c0_38, %c0_39] : memref<1x128xf32, #tpu.memory_space<vmem>>, vector<1x128xf32>
    %45 = vector.broadcast %44 : vector<1x128xf32> to vector<126x128xf32>
    %46 = arith.mulf %43, %45 : vector<126x128xf32>
    %c0_40 = arith.constant 0 : index
    %c0_41 = arith.constant 0 : index
    %47 = vector.load %arg4[%c0_40, %c0_41] : memref<1x128xf32, #tpu.memory_space<vmem>>, vector<1x128xf32>
    %48 = vector.broadcast %47 : vector<1x128xf32> to vector<126x128xf32>
    %49 = arith.addf %46, %48 : vector<126x128xf32>
    %cst_42 = arith.constant 0.000000e+00 : f32
    %50 = vector.broadcast %cst_42 : f32 to vector<126x128xf32>
    %51 = arith.maximumf %49, %50 : vector<126x128xf32>
    %52 = arith.truncf %51 : vector<126x128xf32> to vector<126x128xbf16>
    %c0_43 = arith.constant 0 : index
    %c0_44 = arith.constant 0 : index
    %53 = vector.load %arg5[%c0_43, %c0_44] : memref<126x128xbf16, #tpu.memory_space<vmem>>, vector<126x128xbf16>
    tpu.vector_store %arg5[%c0_43, %c0_44], %52 {strides = array<i32>} : memref<126x128xbf16, #tpu.memory_space<vmem>>, vector<126x128xbf16>,
    return
  }
  func.func @transform_0(%arg0: i32) -> (i32, i32) {
    %c0_i32 = arith.constant 0 : i32
    %c0_i32_0 = arith.constant 0 : i32
    %c0_i32_1 = arith.constant 0 : i32
    return %c0_i32, %c0_i32_0 : i32, i32
  }
  func.func @transform_1(%arg0: i32) -> (i32, i32, i32) {
    %c0_i32 = arith.constant 0 : i32
    %c0_i32_0 = arith.constant 0 : i32
    %c0_i32_1 = arith.constant 0 : i32
    return %c0_i32, %c0_i32_0, %arg0 : i32, i32, i32
  }
  func.func @transform_2(%arg0: i32) -> (i32, i32) {
    %c0_i32 = arith.constant 0 : i32
    %c0_i32_0 = arith.constant 0 : i32
    return %c0_i32, %arg0 : i32, i32
  }
  func.func @transform_3(%arg0: i32) -> (i32, i32) {
    %c0_i32 = arith.constant 0 : i32
    %c0_i32_0 = arith.constant 0 : i32
    return %c0_i32, %arg0 : i32, i32
  }
  func.func @transform_4(%arg0: i32) -> (i32, i32) {
    %c0_i32 = arith.constant 0 : i32
    %c0_i32_0 = arith.constant 0 : i32
    return %c0_i32, %arg0 : i32, i32
  }
}

</mosaic_0001>

<llo_original>
// kernel: tpu_custom_call.1
$region0: #{tpu_custom_call.1}
  #allocation0 [shape = 'u32[]', space=smem, size = 0x4, offset = 0x4, fixed_abs, tag = 'smem constant byte address 0x4 - core index']
  #allocation1 [shape = 'u32[144,128]{1,0:T(1,128)}', space=vmem, size = 0x12000, scoped, tag = 'internal scratch']
  %s0 = inlined_call_operand.vmem [shape: bf16[146,16], index: 0, kind: input, shape index: {}]
  %s1 = inlined_call_operand.vmem [shape: bf16[9,16,128], index: 1, kind: input, shape index: {}]
  %s2 = inlined_call_operand.vmem [shape: f32[1,128], index: 2, kind: input, shape index: {}]
  %s3 = inlined_call_operand.vmem [shape: f32[1,128], index: 3, kind: input, shape index: {}]
  %s4 = inlined_call_operand.hbm [shape: bf16[126,128], index: 4, kind: output, shape index: {}]
  %s5 = sld [smem:[#allocation0]]
  $region26: #{tpu_custom_call.1} parent=0
    _
  %s7 = ssub.s32 1, %s5
  %s8 = scalar_select 0, %s7, %s5
  $region1: #{tpu_custom_call.1} parent=0
    #allocation2 [shape = 'u8[32768]{0}', space=vmem, size = 0x8000, scoped, tag = 'output window, operand 0, single buffered']
    #allocation3 [shape = 's32[1]{0}', space=sflag, size = 0x4, scoped, tag = 'scoped memory for tpu_custom_call.1']
    %9 = vsyncpa [#allocation3], 0
    // Predicated region
    $region2: #{tpu_custom_call.1} parent=1 // pred_check
      _
    $region3: #{tpu_custom_call.1} parent=1 // pred_check_branch
      %11 = sbr.rel (0) target = $region5
    $region4: #{tpu_custom_call.1} parent=1 // pred_region
      _
    $region5: #{tpu_custom_call.1} parent=1 // pred_fallthru
      _
    // Predicated region
    $region6: #{tpu_custom_call.1} parent=1 // pred_check
      _
    $region7: #{tpu_custom_call.1} parent=1 // pred_check_branch
      %13 = sbr.rel (0) target = $region9
    $region8: #{tpu_custom_call.1} parent=1 // pred_region
      _
    $region9: #{tpu_custom_call.1} parent=1 // pred_fallthru
      _
    // Predicated region
    $region10: #{tpu_custom_call.1} parent=1 // pred_check
      _
    $region11: #{tpu_custom_call.1} parent=1 // pred_check_branch
      %15 = sbr.rel (0) target = $region13
    $region12: #{tpu_custom_call.1} parent=1 // pred_region
      _
    $region13: #{tpu_custom_call.1} parent=1 // pred_fallthru
      _
    // Predicated region
    $region14: #{tpu_custom_call.1} parent=1 // pred_check
      _
    $region15: #{tpu_custom_call.1} parent=1 // pred_check_branch
      %17 = sbr.rel (0) target = $region17
    $region16: #{tpu_custom_call.1} parent=1 // pred_region
      _
    $region17: #{tpu_custom_call.1} parent=1 // pred_fallthru
      _
    %v19 = vld [vmem:[%s0] sm:$0xf]
    %v20 = vld [vmem:[%s0 + $0x4] sm:$0xf]
    %v21 = vld [vmem:[%s0 + $0x8] sm:$0xf]
    %v22 = vld [vmem:[%s0 + $0xc] sm:$0xf]
    %v23 = vld [vmem:[%s0 + $0x10] sm:$0xf]
    %v24 = vld [vmem:[%s0 + $0x14] sm:$0xf]
    %v25 = vld [vmem:[%s0 + $0x18] sm:$0xf]
    %v26 = vld [vmem:[%s0 + $0x1c] sm:$0xf]
    %v27 = vld [vmem:[%s0 + $0x20] sm:$0xf]
    %v28 = vld [vmem:[%s0 + $0x24] sm:$0xf]
    %v29 = vld [vmem:[%s0 + $0x28] sm:$0xf]
    %v30 = vld [vmem:[%s0 + $0x2c] sm:$0xf]
    %v31 = vld [vmem:[%s0 + $0x30] sm:$0xf]
    %v32 = vld [vmem:[%s0 + $0x34] sm:$0xf]
    %v33 = vld [vmem:[%s0 + $0x38] sm:$0xf]
    %v34 = vld [vmem:[%s0 + $0x3c] sm:$0x7]
    %v35 = vld [vmem:[%s1] sm:$0xf]
    %v36 = vld [vmem:[%s1 + $0x4] sm:$0xf]
    %v37 = vld [vmem:[%s0 + $0x3c] sm:$0xf]
    %s38 = scalar_lea.vmem %s1, 8
    %v39 = vld [vmem:[%s38] sm:$0xf]
    %v40 = vld [vmem:[%s38 + $0x4] sm:$0xf]
    %v57 = vunpack.c.l.b16 %v19
    %v58 = vunpack.c.l.b16 %v20
    %v59 = vunpack.c.l.b16 %v21
    %v60 = vunpack.c.l.b16 %v22
    %v61 = vunpack.c.l.b16 %v23
    %v62 = vunpack.c.l.b16 %v24
    %v63 = vunpack.c.l.b16 %v25
    %v64 = vunpack.c.l.b16 %v26
    %v65 = vunpack.c.l.b16 %v27
    %v66 = vunpack.c.l.b16 %v28
    %v67 = vunpack.c.l.b16 %v29
    %v68 = vunpack.c.l.b16 %v30
    %v69 = vunpack.c.l.b16 %v31
    %v70 = vunpack.c.l.b16 %v32
    %v71 = vunpack.c.l.b16 %v33
    %v72 = vunpack.c.l.b16 %v37
    %v73 = vpack.c.b16 %v58, %v57
    %v74 = vpack.c.b16 %v60, %v59
    %v75 = vpack.c.b16 %v62, %v61
    %v76 = vpack.c.b16 %v64, %v63
    %v77 = vpack.c.b16 %v66, %v65
    %v78 = vpack.c.b16 %v68, %v67
    %v79 = vpack.c.b16 %v70, %v69
    %v80 = vpack.c.b16 %v72, %v71
    %vm81 = vsmask.f32 7424
    %v83 = vshrl.u32 %v73, 16
    %v85 = vshll.u32 %v73, 16
    %v87 = vrot.slane %v85, 1
    %v88 = vor.u32 %v83, %v87
    %v90 = vshll.u32 %v74, 16
    %v92 = vrot.slane %v90, 1
    %v93 = vsel %vm81, %v88, %v92
    %v94 = vshrl.u32 %v74, 16
    %v96 = vor.u32 %v94, %v92
    %v98 = vshll.u32 %v75, 16
    %v100 = vrot.slane %v98, 1
    %v101 = vsel %vm81, %v96, %v100
    %v102 = vshrl.u32 %v75, 16
    %v104 = vor.u32 %v102, %v100
    %v106 = vshll.u32 %v76, 16
    %v108 = vrot.slane %v106, 1
    %v109 = vsel %vm81, %v104, %v108
    %v110 = vshrl.u32 %v76, 16
    %v112 = vor.u32 %v110, %v108
    %v114 = vshll.u32 %v77, 16
    %v116 = vrot.slane %v114, 1
    %v117 = vsel %vm81, %v112, %v116
    %v118 = vshrl.u32 %v77, 16
    %v120 = vor.u32 %v118, %v116
    %v122 = vshll.u32 %v78, 16
    %v124 = vrot.slane %v122, 1
    %v125 = vsel %vm81, %v120, %v124
    %v126 = vshrl.u32 %v78, 16
    %v128 = vor.u32 %v126, %v124
    %v130 = vshll.u32 %v79, 16
    %v132 = vrot.slane %v130, 1
    %v133 = vsel %vm81, %v128, %v132
    %v134 = vshrl.u32 %v79, 16
    %v136 = vor.u32 %v134, %v132
    %v138 = vshll.u32 %v80, 16
    %v140 = vrot.slane %v138, 1
    %v141 = vsel %vm81, %v136, %v140
    %v142 = vshrl.u32 %v80, 16
    %v144 = vor.u32 %v142, %v140
    %v147 = vunpack.c.l.b16 %v39
    %v148 = vunpack.c.l.b16 %v40
    %v149 = vpack.c.b16 %v148, %v147
    %vm151 = vcmask 130048
    %v153 = vsel %vm151, %v93, 0
    %v156 = vsel %vm151, %v101, 0
    %v159 = vsel %vm151, %v109, 0
    %v162 = vsel %vm151, %v117, 0
    %v165 = vsel %vm151, %v125, 0
    %v168 = vsel %vm151, %v133, 0
    %v171 = vsel %vm151, %v141, 0
    %v174 = vsel %vm151, %v144, 0
    %176 = vmatprep.subr.bf16.mxu0 0
    %177 = vmatpush1.bf16.msra.mxu0 %v149
    %178 = vmatprep.subr.bf16.mxu0 0
    %179 = vmatpush1.bf16.msra.mxu0 0
    %180 = vmatprep.subr.bf16.mxu0 0
    %181 = vmatpush1.bf16.msra.mxu0 0
    %182 = vmatprep.subr.bf16.mxu0 0
    %183 = vmatpush1.bf16.msra.mxu0 0
    %184 = vmatprep.subr.bf16.mxu0 0
    %185 = vmatpush1.bf16.msra.mxu0 0
    %186 = vmatprep.subr.bf16.mxu0 0
    %187 = vmatpush1.bf16.msra.mxu0 0
    %188 = vmatprep.subr.bf16.mxu0 0
    %189 = vmatpush1.bf16.msra.mxu0 0
    %190 = vmatprep.subr.bf16.mxu0 0
    %191 = vmatpush1.bf16.msra.mxu0 0
    %192 = vmatprep.subr.bf16.mxu0 0
    %193 = vmatpush1.bf16.msra.mxu0 0
    %194 = vmatprep.subr.bf16.mxu0 0
    %195 = vmatpush1.bf16.msra.mxu0 0
    %196 = vmatprep.subr.bf16.mxu0 0
    %197 = vmatpush1.bf16.msra.mxu0 0
    %198 = vmatprep.subr.bf16.mxu0 0
    %199 = vmatpush1.bf16.msra.mxu0 0
    %200 = vmatprep.subr.bf16.mxu0 0
    %201 = vmatpush1.bf16.msra.mxu0 0
    %202 = vmatprep.subr.bf16.mxu0 0
    %203 = vmatpush1.bf16.msra.mxu0 0
    %204 = vmatprep.subr.bf16.mxu0 0
    %205 = vmatpush1.bf16.msra.mxu0 0
    %206 = vmatprep.subr.bf16.mxu0 0
    %207 = vmatpush1.bf16.msra.mxu0 0
    %208 = vmatprep.mubr.bf16.mxu0 0
    %209 = vmatmul.mubr.bf16.gmra.mrb[0].mxu0 %v153
    %v210 = vpop.f32.mrb[0].mxu0
    %v211 = vadd.f32 0.0, %v210
    %v212 = vpop.f32.mrb[0].mxu0
    %v213 = vpop.f32.mrb[0].mxu0
    %v214 = vadd.f32 0.0, %v213
    %v215 = vpop.f32.mrb[0].mxu0
    %216 = vmatprep.mubr.bf16.mxu0 0
    %217 = vmatmul.mubr.bf16.gmra.mrb[0].mxu0 %v156
    %v218 = vpop.f32.mrb[0].mxu0
    %v219 = vadd.f32 0.0, %v218
    %v220 = vpop.f32.mrb[0].mxu0
    %v221 = vpop.f32.mrb[0].mxu0
    %v222 = vadd.f32 0.0, %v221
    %v223 = vpop.f32.mrb[0].mxu0
    %224 = vmatprep.mubr.bf16.mxu0 0
    %225 = vmatmul.mubr.bf16.gmra.mrb[0].mxu0 %v159
    %v226 = vpop.f32.mrb[0].mxu0
    %v227 = vadd.f32 0.0, %v226
    %v228 = vpop.f32.mrb[0].mxu0
    %v229 = vpop.f32.mrb[0].mxu0
    %v230 = vadd.f32 0.0, %v229
    %v231 = vpop.f32.mrb[0].mxu0
    %232 = vmatprep.mubr.bf16.mxu0 0
    %233 = vmatmul.mubr.bf16.gmra.mrb[0].mxu0 %v162
    %v234 = vpop.f32.mrb[0].mxu0
    %v235 = vadd.f32 0.0, %v234
    %v236 = vpop.f32.mrb[0].mxu0
    %v237 = vpop.f32.mrb[0].mxu0
    %v238 = vadd.f32 0.0, %v237
    %v239 = vpop.f32.mrb[0].mxu0
    %240 = vmatprep.mubr.bf16.mxu0 0
    %241 = vmatmul.mubr.bf16.gmra.mrb[0].mxu0 %v165
    %v242 = vpop.f32.mrb[0].mxu0
    %v243 = vadd.f32 0.0, %v242
    %v244 = vpop.f32.mrb[0].mxu0
    %v245 = vpop.f32.mrb[0].mxu0
    %v246 = vadd.f32 0.0, %v245
    %v247 = vpop.f32.mrb[0].mxu0
    %248 = vmatprep.mubr.bf16.mxu0 0
    %249 = vmatmul.mubr.bf16.gmra.mrb[0].mxu0 %v168
    %v250 = vpop.f32.mrb[0].mxu0
    %v251 = vadd.f32 0.0, %v250
    %v252 = vpop.f32.mrb[0].mxu0
    %v253 = vpop.f32.mrb[0].mxu0
    %v254 = vadd.f32 0.0, %v253
    %v255 = vpop.f32.mrb[0].mxu0
    %256 = vmatprep.mubr.bf16.mxu0 0
    %257 = vmatmul.mubr.bf16.gmra.mrb[0].mxu0 %v171
    %v258 = vpop.f32.mrb[0].mxu0
    %v259 = vadd.f32 0.0, %v258
    %v260 = vpop.f32.mrb[0].mxu0
    %v261 = vpop.f32.mrb[0].mxu0
    %v262 = vadd.f32 0.0, %v261
    %v263 = vpop.f32.mrb[0].mxu0
    %264 = vmatprep.mubr.bf16.mxu0 0
    %265 = vmatmul.mubr.bf16.gmra.mrb[0].mxu0 %v174
    %v266 = vpop.f32.mrb[0].mxu0
    %v267 = vadd.f32 0.0, %v266
    %v268 = vpop.f32.mrb[0].mxu0
    %v269 = vpop.f32.mrb[0].mxu0
    %v270 = vadd.f32 0.0, %v269
    %v271 = vpop.f32.mrb[0].mxu0
    %272 = vdwg.mxu0
    %v274 = vunpack.c.l.b16 %v34
    %v275 = vpack.c.b16 %v274, %v71
    %v278 = vunpack.c.l.b16 %v35
    %v279 = vunpack.c.l.b16 %v36
    %v280 = vpack.c.b16 %v279, %v278
    %v282 = vsel %vm151, %v73, 0
    %v284 = vsel %vm151, %v74, 0
    %v286 = vsel %vm151, %v75, 0
    %v288 = vsel %vm151, %v76, 0
    %v290 = vsel %vm151, %v77, 0
    %v292 = vsel %vm151, %v78, 0
    %v294 = vsel %vm151, %v79, 0
    %v297 = vsel %vm151, %v275, 0
    %299 = vmatprep.subr.bf16.mxu0 0
    %300 = vmatpush1.bf16.msra.mxu0 %v280
    %301 = vmatprep.subr.bf16.mxu0 0
    %302 = vmatpush1.bf16.msra.mxu0 0
    %303 = vmatprep.subr.bf16.mxu0 0
    %304 = vmatpush1.bf16.msra.mxu0 0
    %305 = vmatprep.subr.bf16.mxu0 0
    %306 = vmatpush1.bf16.msra.mxu0 0
    %307 = vmatprep.subr.bf16.mxu0 0
    %308 = vmatpush1.bf16.msra.mxu0 0
    %309 = vmatprep.subr.bf16.mxu0 0
    %310 = vmatpush1.bf16.msra.mxu0 0
    %311 = vmatprep.subr.bf16.mxu0 0
    %312 = vmatpush1.bf16.msra.mxu0 0
    %313 = vmatprep.subr.bf16.mxu0 0
    %314 = vmatpush1.bf16.msra.mxu0 0
    %315 = vmatprep.subr.bf16.mxu0 0
    %316 = vmatpush1.bf16.msra.mxu0 0
    %317 = vmatprep.subr.bf16.mxu0 0
    %318 = vmatpush1.bf16.msra.mxu0 0
    %319 = vmatprep.subr.bf16.mxu0 0
    %320 = vmatpush1.bf16.msra.mxu0 0
    %321 = vmatprep.subr.bf16.mxu0 0
    %322 = vmatpush1.bf16.msra.mxu0 0
    %323 = vmatprep.subr.bf16.mxu0 0
    %324 = vmatpush1.bf16.msra.mxu0 0
    %325 = vmatprep.subr.bf16.mxu0 0
    %326 = vmatpush1.bf16.msra.mxu0 0
    %327 = vmatprep.subr.bf16.mxu0 0
    %328 = vmatpush1.bf16.msra.mxu0 0
    %329 = vmatprep.subr.bf16.mxu0 0
    %330 = vmatpush1.bf16.msra.mxu0 0
    %331 = vmatprep.mubr.bf16.mxu0 0
    %332 = vmatmul.mubr.bf16.gmra.mrb[0].mxu0 %v282
    %v333 = vpop.f32.mrb[0].mxu0
    %v334 = vadd.f32 %v211, %v333
    %v335 = vpop.f32.mrb[0].mxu0
    %v336 = vpop.f32.mrb[0].mxu0
    %v337 = vadd.f32 %v214, %v336
    %v338 = vpop.f32.mrb[0].mxu0
    %339 = vmatprep.mubr.bf16.mxu0 0
    %340 = vmatmul.mubr.bf16.gmra.mrb[0].mxu0 %v284
    %v341 = vpop.f32.mrb[0].mxu0
    %v342 = vadd.f32 %v219, %v341
    %v343 = vpop.f32.mrb[0].mxu0
    %v344 = vpop.f32.mrb[0].mxu0
    %v345 = vadd.f32 %v222, %v344
    %v346 = vpop.f32.mrb[0].mxu0
    %347 = vmatprep.mubr.bf16.mxu0 0
    %348 = vmatmul.mubr.bf16.gmra.mrb[0].mxu0 %v286
    %v349 = vpop.f32.mrb[0].mxu0
    %v350 = vadd.f32 %v227, %v349
    %v351 = vpop.f32.mrb[0].mxu0
    %v352 = vpop.f32.mrb[0].mxu0
    %v353 = vadd.f32 %v230, %v352
    %v354 = vpop.f32.mrb[0].mxu0
    %355 = vmatprep.mubr.bf16.mxu0 0
    %356 = vmatmul.mubr.bf16.gmra.mrb[0].mxu0 %v288
    %v357 = vpop.f32.mrb[0].mxu0
    %v358 = vadd.f32 %v235, %v357
    %v359 = vpop.f32.mrb[0].mxu0
    %v360 = vpop.f32.mrb[0].mxu0
    %v361 = vadd.f32 %v238, %v360
    %v362 = vpop.f32.mrb[0].mxu0
    %363 = vmatprep.mubr.bf16.mxu0 0
    %364 = vmatmul.mubr.bf16.gmra.mrb[0].mxu0 %v290
    %v365 = vpop.f32.mrb[0].mxu0
    %v366 = vadd.f32 %v243, %v365
    %v367 = vpop.f32.mrb[0].mxu0
    %v368 = vpop.f32.mrb[0].mxu0
    %v369 = vadd.f32 %v246, %v368
    %v370 = vpop.f32.mrb[0].mxu0
    %371 = vmatprep.mubr.bf16.mxu0 0
    %372 = vmatmul.mubr.bf16.gmra.mrb[0].mxu0 %v292
    %v373 = vpop.f32.mrb[0].mxu0
    %v374 = vadd.f32 %v251, %v373
    %v375 = vpop.f32.mrb[0].mxu0
    %v376 = vpop.f32.mrb[0].mxu0
    %v377 = vadd.f32 %v254, %v376
    %v378 = vpop.f32.mrb[0].mxu0
    %379 = vmatprep.mubr.bf16.mxu0 0
    %380 = vmatmul.mubr.bf16.gmra.mrb[0].mxu0 %v294
    %v381 = vpop.f32.mrb[0].mxu0
    %v382 = vadd.f32 %v259, %v381
    %v383 = vpop.f32.mrb[0].mxu0
    %v384 = vpop.f32.mrb[0].mxu0
    %v385 = vadd.f32 %v262, %v384
    %v386 = vpop.f32.mrb[0].mxu0
    %387 = vmatprep.mubr.bf16.mxu0 0
    %388 = vmatmul.mubr.bf16.gmra.mrb[0].mxu0 %v297
    %v389 = vpop.f32.mrb[0].mxu0
    %v390 = vadd.f32 %v267, %v389
    %v391 = vpop.f32.mrb[0].mxu0
    %v392 = vpop.f32.mrb[0].mxu0
    %v393 = vadd.f32 %v270, %v392
    %v394 = vpop.f32.mrb[0].mxu0
    %395 = vdwg.mxu0
    %v396 = vld [vmem:[%s0] sm:$0xe]
    %s397 = scalar_lea.vmem %s1, 16
    %v398 = vld [vmem:[%s397] sm:$0xf]
    %v399 = vld [vmem:[%s397 + $0x4] sm:$0xf]
    %v401 = vunpack.c.l.b16 %v396
    %v402 = vpack.c.b16 %v58, %v401
    %vm403 = vcmask 1046528
    %v404 = vrot.slane %v402, 1
    %v405 = vrot.slane %v74, 1
    %v406 = vsel %vm403, %v404, %v405
    %v407 = vrot.slane %v75, 1
    %v408 = vsel %vm403, %v405, %v407
    %v409 = vrot.slane %v76, 1
    %v410 = vsel %vm403, %v407, %v409
    %v411 = vrot.slane %v77, 1
    %v412 = vsel %vm403, %v409, %v411
    %v413 = vrot.slane %v78, 1
    %v414 = vsel %vm403, %v411, %v413
    %v415 = vrot.slane %v79, 1
    %v416 = vsel %vm403, %v413, %v415
    %v417 = vrot.slane %v80, 1
    %v418 = vsel %vm403, %v415, %v417
    %v421 = vunpack.c.l.b16 %v398
    %v422 = vunpack.c.l.b16 %v399
    %v423 = vpack.c.b16 %v422, %v421
    %v426 = vsel %vm151, %v406, 0
    %v429 = vsel %vm151, %v408, 0
    %v432 = vsel %vm151, %v410, 0
    %v435 = vsel %vm151, %v412, 0
    %v438 = vsel %vm151, %v414, 0
    %v441 = vsel %vm151, %v416, 0
    %v444 = vsel %vm151, %v418, 0
    %v447 = vsel %vm151, %v417, 0
    %449 = vmatprep.subr.bf16.mxu0 0
    %450 = vmatpush1.bf16.msra.mxu0 %v423
    %451 = vmatprep.subr.bf16.mxu0 0
    %452 = vmatpush1.bf16.msra.mxu0 0
    %453 = vmatprep.subr.bf16.mxu0 0
    %454 = vmatpush1.bf16.msra.mxu0 0
    %455 = vmatprep.subr.bf16.mxu0 0
    %456 = vmatpush1.bf16.msra.mxu0 0
    %457 = vmatprep.subr.bf16.mxu0 0
    %458 = vmatpush1.bf16.msra.mxu0 0
    %459 = vmatprep.subr.bf16.mxu0 0
    %460 = vmatpush1.bf16.msra.mxu0 0
    %461 = vmatprep.subr.bf16.mxu0 0
    %462 = vmatpush1.bf16.msra.mxu0 0
    %463 = vmatprep.subr.bf16.mxu0 0
    %464 = vmatpush1.bf16.msra.mxu0 0
    %465 = vmatprep.subr.bf16.mxu0 0
    %466 = vmatpush1.bf16.msra.mxu0 0
    %467 = vmatprep.subr.bf16.mxu0 0
    %468 = vmatpush1.bf16.msra.mxu0 0
    %469 = vmatprep.subr.bf16.mxu0 0
    %470 = vmatpush1.bf16.msra.mxu0 0
    %471 = vmatprep.subr.bf16.mxu0 0
    %472 = vmatpush1.bf16.msra.mxu0 0
    %473 = vmatprep.subr.bf16.mxu0 0
    %474 = vmatpush1.bf16.msra.mxu0 0
    %475 = vmatprep.subr.bf16.mxu0 0
    %476 = vmatpush1.bf16.msra.mxu0 0
    %477 = vmatprep.subr.bf16.mxu0 0
    %478 = vmatpush1.bf16.msra.mxu0 0
    %479 = vmatprep.subr.bf16.mxu0 0
    %480 = vmatpush1.bf16.msra.mxu0 0
    %481 = vmatprep.mubr.bf16.mxu0 0
    %482 = vmatmul.mubr.bf16.gmra.mrb[0].mxu0 %v426
    %v483 = vpop.f32.mrb[0].mxu0
    %v484 = vadd.f32 0.0, %v483
    %v485 = vpop.f32.mrb[0].mxu0
    %v486 = vpop.f32.mrb[0].mxu0
    %v487 = vadd.f32 0.0, %v486
    %v488 = vpop.f32.mrb[0].mxu0
    %489 = vmatprep.mubr.bf16.mxu0 0
    %490 = vmatmul.mubr.bf16.gmra.mrb[0].mxu0 %v429
    %v491 = vpop.f32.mrb[0].mxu0
    %v492 = vadd.f32 0.0, %v491
    %v493 = vpop.f32.mrb[0].mxu0
    %v494 = vpop.f32.mrb[0].mxu0
    %v495 = vadd.f32 0.0, %v494
    %v496 = vpop.f32.mrb[0].mxu0
    %497 = vmatprep.mubr.bf16.mxu0 0
    %498 = vmatmul.mubr.bf16.gmra.mrb[0].mxu0 %v432
    %v499 = vpop.f32.mrb[0].mxu0
    %v500 = vadd.f32 0.0, %v499
    %v501 = vpop.f32.mrb[0].mxu0
    %v502 = vpop.f32.mrb[0].mxu0
    %v503 = vadd.f32 0.0, %v502
    %v504 = vpop.f32.mrb[0].mxu0
    %505 = vmatprep.mubr.bf16.mxu0 0
    %506 = vmatmul.mubr.bf16.gmra.mrb[0].mxu0 %v435
    %v507 = vpop.f32.mrb[0].mxu0
    %v508 = vadd.f32 0.0, %v507
    %v509 = vpop.f32.mrb[0].mxu0
    %v510 = vpop.f32.mrb[0].mxu0
    %v511 = vadd.f32 0.0, %v510
    %v512 = vpop.f32.mrb[0].mxu0
    %513 = vmatprep.mubr.bf16.mxu0 0
    %514 = vmatmul.mubr.bf16.gmra.mrb[0].mxu0 %v438
    %v515 = vpop.f32.mrb[0].mxu0
    %v516 = vadd.f32 0.0, %v515
    %v517 = vpop.f32.mrb[0].mxu0
    %v518 = vpop.f32.mrb[0].mxu0
    %v519 = vadd.f32 0.0, %v518
    %v520 = vpop.f32.mrb[0].mxu0
    %521 = vmatprep.mubr.bf16.mxu0 0
    %522 = vmatmul.mubr.bf16.gmra.mrb[0].mxu0 %v441
    %v523 = vpop.f32.mrb[0].mxu0
    %v524 = vadd.f32 0.0, %v523
    %v525 = vpop.f32.mrb[0].mxu0
    %v526 = vpop.f32.mrb[0].mxu0
    %v527 = vadd.f32 0.0, %v526
    %v528 = vpop.f32.mrb[0].mxu0
    %529 = vmatprep.mubr.bf16.mxu0 0
    %530 = vmatmul.mubr.bf16.gmra.mrb[0].mxu0 %v444
    %v531 = vpop.f32.mrb[0].mxu0
    %v532 = vadd.f32 0.0, %v531
    %v533 = vpop.f32.mrb[0].mxu0
    %v534 = vpop.f32.mrb[0].mxu0
    %v535 = vadd.f32 0.0, %v534
    %v536 = vpop.f32.mrb[0].mxu0
    %537 = vmatprep.mubr.bf16.mxu0 0
    %538 = vmatmul.mubr.bf16.gmra.mrb[0].mxu0 %v447
    %v539 = vpop.f32.mrb[0].mxu0
    %v540 = vadd.f32 0.0, %v539
    %v541 = vpop.f32.mrb[0].mxu0
    %v542 = vpop.f32.mrb[0].mxu0
    %v543 = vadd.f32 0.0, %v542
    %v544 = vpop.f32.mrb[0].mxu0
    %545 = vdwg.mxu0
    %v546 = vadd.f32 %v334, %v484
    %v547 = vadd.f32 %v337, %v487
    %v548 = vadd.f32 %v342, %v492
    %v549 = vadd.f32 %v345, %v495
    %v550 = vadd.f32 %v350, %v500
    %v551 = vadd.f32 %v353, %v503
    %v552 = vadd.f32 %v358, %v508
    %v553 = vadd.f32 %v361, %v511
    %v554 = vadd.f32 %v366, %v516
    %v555 = vadd.f32 %v369, %v519
    %v556 = vadd.f32 %v374, %v524
    %v557 = vadd.f32 %v377, %v527
    %v558 = vadd.f32 %v382, %v532
    %v559 = vadd.f32 %v385, %v535
    %v560 = vadd.f32 %v390, %v540
    %v561 = vadd.f32 %v393, %v543
    %v562 = vld [vmem:[%s0 + $0x4] sm:$0xf]
    %v563 = vld [vmem:[%s0 + $0x8] sm:$0xf]
    %v564 = vld [vmem:[%s0 + $0xc] sm:$0xf]
    %v565 = vld [vmem:[%s0 + $0x10] sm:$0xf]
    %v566 = vld [vmem:[%s0 + $0x14] sm:$0xf]
    %v567 = vld [vmem:[%s0 + $0x18] sm:$0xf]
    %v568 = vld [vmem:[%s0 + $0x1c] sm:$0xf]
    %v569 = vld [vmem:[%s0 + $0x20] sm:$0xf]
    %v570 = vld [vmem:[%s0 + $0x24] sm:$0xf]
    %v571 = vld [vmem:[%s0 + $0x28] sm:$0xf]
    %v572 = vld [vmem:[%s0 + $0x2c] sm:$0xf]
    %v573 = vld [vmem:[%s0 + $0x30] sm:$0xf]
    %v574 = vld [vmem:[%s0 + $0x34] sm:$0xf]
    %v575 = vld [vmem:[%s0 + $0x38] sm:$0xf]
    %v576 = vld [vmem:[%s0 + $0x3c] sm:$0xf]
    %v577 = vld [vmem:[%s0 + $0x40] sm:$0xf]
    %s578 = scalar_lea.vmem %s1, 24
    %v579 = vld [vmem:[%s578] sm:$0xf]
    %v580 = vld [vmem:[%s578 + $0x4] sm:$0xf]
    %v597 = vunpack.c.l.b16 %v562
    %v598 = vunpack.c.l.b16 %v563
    %v599 = vunpack.c.l.b16 %v564
    %v600 = vunpack.c.l.b16 %v565
    %v601 = vunpack.c.l.b16 %v566
    %v602 = vunpack.c.l.b16 %v567
    %v603 = vunpack.c.l.b16 %v568
    %v604 = vunpack.c.l.b16 %v569
    %v605 = vunpack.c.l.b16 %v570
    %v606 = vunpack.c.l.b16 %v571
    %v607 = vunpack.c.l.b16 %v572
    %v608 = vunpack.c.l.b16 %v573
    %v609 = vunpack.c.l.b16 %v574
    %v610 = vunpack.c.l.b16 %v575
    %v611 = vunpack.c.l.b16 %v576
    %v612 = vunpack.c.l.b16 %v577
    %v613 = vpack.c.b16 %v598, %v597
    %v614 = vpack.c.b16 %v600, %v599
    %v615 = vpack.c.b16 %v602, %v601
    %v616 = vpack.c.b16 %v604, %v603
    %v617 = vpack.c.b16 %v606, %v605
    %v618 = vpack.c.b16 %v608, %v607
    %v619 = vpack.c.b16 %v610, %v609
    %v620 = vpack.c.b16 %v612, %v611
    %v622 = vshrl.u32 %v613, 16
    %v624 = vshll.u32 %v613, 16
    %v626 = vrot.slane %v624, 1
    %v627 = vor.u32 %v622, %v626
    %v629 = vshll.u32 %v614, 16
    %v631 = vrot.slane %v629, 1
    %v632 = vsel %vm81, %v627, %v631
    %v633 = vshrl.u32 %v614, 16
    %v635 = vor.u32 %v633, %v631
    %v637 = vshll.u32 %v615, 16
    %v639 = vrot.slane %v637, 1
    %v640 = vsel %vm81, %v635, %v639
    %v641 = vshrl.u32 %v615, 16
    %v643 = vor.u32 %v641, %v639
    %v645 = vshll.u32 %v616, 16
    %v647 = vrot.slane %v645, 1
    %v648 = vsel %vm81, %v643, %v647
    %v649 = vshrl.u32 %v616, 16
    %v651 = vor.u32 %v649, %v647
    %v653 = vshll.u32 %v617, 16
    %v655 = vrot.slane %v653, 1
    %v656 = vsel %vm81, %v651, %v655
    %v657 = vshrl.u32 %v617, 16
    %v659 = vor.u32 %v657, %v655
    %v661 = vshll.u32 %v618, 16
    %v663 = vrot.slane %v661, 1
    %v664 = vsel %vm81, %v659, %v663
    %v665 = vshrl.u32 %v618, 16
    %v667 = vor.u32 %v665, %v663
    %v669 = vshll.u32 %v619, 16
    %v671 = vrot.slane %v669, 1
    %v672 = vsel %vm81, %v667, %v671
    %v673 = vshrl.u32 %v619, 16
    %v675 = vor.u32 %v673, %v671
    %v677 = vshll.u32 %v620, 16
    %v679 = vrot.slane %v677, 1
    %v680 = vsel %vm81, %v675, %v679
    %v681 = vshrl.u32 %v620, 16
    %v683 = vor.u32 %v681, %v679
    %v686 = vunpack.c.l.b16 %v579
    %v687 = vunpack.c.l.b16 %v580
    %v688 = vpack.c.b16 %v687, %v686
    %v691 = vsel %vm151, %v632, 0
    %v694 = vsel %vm151, %v640, 0
    %v697 = vsel %vm151, %v648, 0
    %v700 = vsel %vm151, %v656, 0
    %v703 = vsel %vm151, %v664, 0
    %v706 = vsel %vm151, %v672, 0
    %v709 = vsel %vm151, %v680, 0
    %v712 = vsel %vm151, %v683, 0
    %714 = vmatprep.subr.bf16.mxu0 0
    %715 = vmatpush1.bf16.msra.mxu0 %v688
    %716 = vmatprep.subr.bf16.mxu0 0
    %717 = vmatpush1.bf16.msra.mxu0 0
    %718 = vmatprep.subr.bf16.mxu0 0
    %719 = vmatpush1.bf16.msra.mxu0 0
    %720 = vmatprep.subr.bf16.mxu0 0
    %721 = vmatpush1.bf16.msra.mxu0 0
    %722 = vmatprep.subr.bf16.mxu0 0
    %723 = vmatpush1.bf16.msra.mxu0 0
    %724 = vmatprep.subr.bf16.mxu0 0
    %725 = vmatpush1.bf16.msra.mxu0 0
    %726 = vmatprep.subr.bf16.mxu0 0
    %727 = vmatpush1.bf16.msra.mxu0 0
    %728 = vmatprep.subr.bf16.mxu0 0
    %729 = vmatpush1.bf16.msra.mxu0 0
    %730 = vmatprep.subr.bf16.mxu0 0
    %731 = vmatpush1.bf16.msra.mxu0 0
    %732 = vmatprep.subr.bf16.mxu0 0
    %733 = vmatpush1.bf16.msra.mxu0 0
    %734 = vmatprep.subr.bf16.mxu0 0
    %735 = vmatpush1.bf16.msra.mxu0 0
    %736 = vmatprep.subr.bf16.mxu0 0
    %737 = vmatpush1.bf16.msra.mxu0 0
    %738 = vmatprep.subr.bf16.mxu0 0
    %739 = vmatpush1.bf16.msra.mxu0 0
    %740 = vmatprep.subr.bf16.mxu0 0
    %741 = vmatpush1.bf16.msra.mxu0 0
    %742 = vmatprep.subr.bf16.mxu0 0
    %743 = vmatpush1.bf16.msra.mxu0 0
    %744 = vmatprep.subr.bf16.mxu0 0
    %745 = vmatpush1.bf16.msra.mxu0 0
    %746 = vmatprep.mubr.bf16.mxu0 0
    %747 = vmatmul.mubr.bf16.gmra.mrb[0].mxu0 %v691
    %v748 = vpop.f32.mrb[0].mxu0
    %v749 = vadd.f32 0.0, %v748
    %v750 = vpop.f32.mrb[0].mxu0
    %v751 = vpop.f32.mrb[0].mxu0
    %v752 = vadd.f32 0.0, %v751
    %v753 = vpop.f32.mrb[0].mxu0
    %754 = vmatprep.mubr.bf16.mxu0 0
    %755 = vmatmul.mubr.bf16.gmra.mrb[0].mxu0 %v694
    %v756 = vpop.f32.mrb[0].mxu0
    %v757 = vadd.f32 0.0, %v756
    %v758 = vpop.f32.mrb[0].mxu0
    %v759 = vpop.f32.mrb[0].mxu0
    %v760 = vadd.f32 0.0, %v759
    %v761 = vpop.f32.mrb[0].mxu0
    %762 = vmatprep.mubr.bf16.mxu0 0
    %763 = vmatmul.mubr.bf16.gmra.mrb[0].mxu0 %v697
    %v764 = vpop.f32.mrb[0].mxu0
    %v765 = vadd.f32 0.0, %v764
    %v766 = vpop.f32.mrb[0].mxu0
    %v767 = vpop.f32.mrb[0].mxu0
    %v768 = vadd.f32 0.0, %v767
    %v769 = vpop.f32.mrb[0].mxu0
    %770 = vmatprep.mubr.bf16.mxu0 0
    %771 = vmatmul.mubr.bf16.gmra.mrb[0].mxu0 %v700
    %v772 = vpop.f32.mrb[0].mxu0
    %v773 = vadd.f32 0.0, %v772
    %v774 = vpop.f32.mrb[0].mxu0
    %v775 = vpop.f32.mrb[0].mxu0
    %v776 = vadd.f32 0.0, %v775
    %v777 = vpop.f32.mrb[0].mxu0
    %778 = vmatprep.mubr.bf16.mxu0 0
    %779 = vmatmul.mubr.bf16.gmra.mrb[0].mxu0 %v703
    %v780 = vpop.f32.mrb[0].mxu0
    %v781 = vadd.f32 0.0, %v780
    %v782 = vpop.f32.mrb[0].mxu0
    %v783 = vpop.f32.mrb[0].mxu0
    %v784 = vadd.f32 0.0, %v783
    %v785 = vpop.f32.mrb[0].mxu0
    %786 = vmatprep.mubr.bf16.mxu0 0
    %787 = vmatmul.mubr.bf16.gmra.mrb[0].mxu0 %v706
    %v788 = vpop.f32.mrb[0].mxu0
    %v789 = vadd.f32 0.0, %v788
    %v790 = vpop.f32.mrb[0].mxu0
    %v791 = vpop.f32.mrb[0].mxu0
    %v792 = vadd.f32 0.0, %v791
    %v793 = vpop.f32.mrb[0].mxu0
    %794 = vmatprep.mubr.bf16.mxu0 0
    %795 = vmatmul.mubr.bf16.gmra.mrb[0].mxu0 %v709
    %v796 = vpop.f32.mrb[0].mxu0
    %v797 = vadd.f32 0.0, %v796
    %v798 = vpop.f32.mrb[0].mxu0
    %v799 = vpop.f32.mrb[0].mxu0
    %v800 = vadd.f32 0.0, %v799
    %v801 = vpop.f32.mrb[0].mxu0
    %802 = vmatprep.mubr.bf16.mxu0 0
    %803 = vmatmul.mubr.bf16.gmra.mrb[0].mxu0 %v712
    %v804 = vpop.f32.mrb[0].mxu0
    %v805 = vadd.f32 0.0, %v804
    %v806 = vpop.f32.mrb[0].mxu0
    %v807 = vpop.f32.mrb[0].mxu0
    %v808 = vadd.f32 0.0, %v807
    %v809 = vpop.f32.mrb[0].mxu0
    %810 = vdwg.mxu0
    %v811 = vadd.f32 %v546, %v749
    %v812 = vadd.f32 %v547, %v752
    %v813 = vadd.f32 %v548, %v757
    %v814 = vadd.f32 %v549, %v760
    %v815 = vadd.f32 %v550, %v765
    %v816 = vadd.f32 %v551, %v768
    %v817 = vadd.f32 %v552, %v773
    %v818 = vadd.f32 %v553, %v776
    %v819 = vadd.f32 %v554, %v781
    %v820 = vadd.f32 %v555, %v784
    %v821 = vadd.f32 %v556, %v789
    %v822 = vadd.f32 %v557, %v792
    %v823 = vadd.f32 %v558, %v797
    %v824 = vadd.f32 %v559, %v800
    %v825 = vadd.f32 %v560, %v805
    %v826 = vadd.f32 %v561, %v808
    %v827 = vld [vmem:[%s0 + $0x4] sm:$0xe]
    %s828 = scalar_lea.vmem %s1, 32
    %v829 = vld [vmem:[%s828] sm:$0xf]
    %v830 = vld [vmem:[%s828 + $0x4] sm:$0xf]
    %v832 = vunpack.c.l.b16 %v827
    %v833 = vpack.c.b16 %v598, %v832
    %v834 = vrot.slane %v833, 1
    %v835 = vrot.slane %v614, 1
    %v836 = vsel %vm403, %v834, %v835
    %v837 = vrot.slane %v615, 1
    %v838 = vsel %vm403, %v835, %v837
    %v839 = vrot.slane %v616, 1
    %v840 = vsel %vm403, %v837, %v839
    %v841 = vrot.slane %v617, 1
    %v842 = vsel %vm403, %v839, %v841
    %v843 = vrot.slane %v618, 1
    %v844 = vsel %vm403, %v841, %v843
    %v845 = vrot.slane %v619, 1
    %v846 = vsel %vm403, %v843, %v845
    %v847 = vrot.slane %v620, 1
    %v848 = vsel %vm403, %v845, %v847
    %v851 = vunpack.c.l.b16 %v829
    %v852 = vunpack.c.l.b16 %v830
    %v853 = vpack.c.b16 %v852, %v851
    %v856 = vsel %vm151, %v836, 0
    %v859 = vsel %vm151, %v838, 0
    %v862 = vsel %vm151, %v840, 0
    %v865 = vsel %vm151, %v842, 0
    %v868 = vsel %vm151, %v844, 0
    %v871 = vsel %vm151, %v846, 0
    %v874 = vsel %vm151, %v848, 0
    %v877 = vsel %vm151, %v847, 0
    %879 = vmatprep.subr.bf16.mxu0 0
    %880 = vmatpush1.bf16.msra.mxu0 %v853
    %881 = vmatprep.subr.bf16.mxu0 0
    %882 = vmatpush1.bf16.msra.mxu0 0
    %883 = vmatprep.subr.bf16.mxu0 0
    %884 = vmatpush1.bf16.msra.mxu0 0
    %885 = vmatprep.subr.bf16.mxu0 0
    %886 = vmatpush1.bf16.msra.mxu0 0
    %887 = vmatprep.subr.bf16.mxu0 0
    %888 = vmatpush1.bf16.msra.mxu0 0
    %889 = vmatprep.subr.bf16.mxu0 0
    %890 = vmatpush1.bf16.msra.mxu0 0
    %891 = vmatprep.subr.bf16.mxu0 0
    %892 = vmatpush1.bf16.msra.mxu0 0
    %893 = vmatprep.subr.bf16.mxu0 0
    %894 = vmatpush1.bf16.msra.mxu0 0
    %895 = vmatprep.subr.bf16.mxu0 0
    %896 = vmatpush1.bf16.msra.mxu0 0
    %897 = vmatprep.subr.bf16.mxu0 0
    %898 = vmatpush1.bf16.msra.mxu0 0
    %899 = vmatprep.subr.bf16.mxu0 0
    %900 = vmatpush1.bf16.msra.mxu0 0
    %901 = vmatprep.subr.bf16.mxu0 0
    %902 = vmatpush1.bf16.msra.mxu0 0
    %903 = vmatprep.subr.bf16.mxu0 0
    %904 = vmatpush1.bf16.msra.mxu0 0
    %905 = vmatprep.subr.bf16.mxu0 0
    %906 = vmatpush1.bf16.msra.mxu0 0
    %907 = vmatprep.subr.bf16.mxu0 0
    %908 = vmatpush1.bf16.msra.mxu0 0
    %909 = vmatprep.subr.bf16.mxu0 0
    %910 = vmatpush1.bf16.msra.mxu0 0
    %911 = vmatprep.mubr.bf16.mxu0 0
    %912 = vmatmul.mubr.bf16.gmra.mrb[0].mxu0 %v856
    %v913 = vpop.f32.mrb[0].mxu0
    %v914 = vadd.f32 0.0, %v913
    %v915 = vpop.f32.mrb[0].mxu0
    %v916 = vpop.f32.mrb[0].mxu0
    %v917 = vadd.f32 0.0, %v916
    %v918 = vpop.f32.mrb[0].mxu0
    %919 = vmatprep.mubr.bf16.mxu0 0
    %920 = vmatmul.mubr.bf16.gmra.mrb[0].mxu0 %v859
    %v921 = vpop.f32.mrb[0].mxu0
    %v922 = vadd.f32 0.0, %v921
    %v923 = vpop.f32.mrb[0].mxu0
    %v924 = vpop.f32.mrb[0].mxu0
    %v925 = vadd.f32 0.0, %v924
    %v926 = vpop.f32.mrb[0].mxu0
    %927 = vmatprep.mubr.bf16.mxu0 0
    %928 = vmatmul.mubr.bf16.gmra.mrb[0].mxu0 %v862
    %v929 = vpop.f32.mrb[0].mxu0
    %v930 = vadd.f32 0.0, %v929
    %v931 = vpop.f32.mrb[0].mxu0
    %v932 = vpop.f32.mrb[0].mxu0
    %v933 = vadd.f32 0.0, %v932
    %v934 = vpop.f32.mrb[0].mxu0
    %935 = vmatprep.mubr.bf16.mxu0 0
    %936 = vmatmul.mubr.bf16.gmra.mrb[0].mxu0 %v865
    %v937 = vpop.f32.mrb[0].mxu0
    %v938 = vadd.f32 0.0, %v937
    %v939 = vpop.f32.mrb[0].mxu0
    %v940 = vpop.f32.mrb[0].mxu0
    %v941 = vadd.f32 0.0, %v940
    %v942 = vpop.f32.mrb[0].mxu0
    %943 = vmatprep.mubr.bf16.mxu0 0
    %944 = vmatmul.mubr.bf16.gmra.mrb[0].mxu0 %v868
    %v945 = vpop.f32.mrb[0].mxu0
    %v946 = vadd.f32 0.0, %v945
    %v947 = vpop.f32.mrb[0].mxu0
    %v948 = vpop.f32.mrb[0].mxu0
    %v949 = vadd.f32 0.0, %v948
    %v950 = vpop.f32.mrb[0].mxu0
    %951 = vmatprep.mubr.bf16.mxu0 0
    %952 = vmatmul.mubr.bf16.gmra.mrb[0].mxu0 %v871
    %v953 = vpop.f32.mrb[0].mxu0
    %v954 = vadd.f32 0.0, %v953
    %v955 = vpop.f32.mrb[0].mxu0
    %v956 = vpop.f32.mrb[0].mxu0
    %v957 = vadd.f32 0.0, %v956
    %v958 = vpop.f32.mrb[0].mxu0
    %959 = vmatprep.mubr.bf16.mxu0 0
    %960 = vmatmul.mubr.bf16.gmra.mrb[0].mxu0 %v874
    %v961 = vpop.f32.mrb[0].mxu0
    %v962 = vadd.f32 0.0, %v961
    %v963 = vpop.f32.mrb[0].mxu0
    %v964 = vpop.f32.mrb[0].mxu0
    %v965 = vadd.f32 0.0, %v964
    %v966 = vpop.f32.mrb[0].mxu0
    %967 = vmatprep.mubr.bf16.mxu0 0
    %968 = vmatmul.mubr.bf16.gmra.mrb[0].mxu0 %v877
    %v969 = vpop.f32.mrb[0].mxu0
    %v970 = vadd.f32 0.0, %v969
    %v971 = vpop.f32.mrb[0].mxu0
    %v972 = vpop.f32.mrb[0].mxu0
    %v973 = vadd.f32 0.0, %v972
    %v974 = vpop.f32.mrb[0].mxu0
    %975 = vdwg.mxu0
    %v976 = vadd.f32 %v811, %v914
    %v977 = vadd.f32 %v812, %v917
    %v978 = vadd.f32 %v813, %v922
    %v979 = vadd.f32 %v814, %v925
    %v980 = vadd.f32 %v815, %v930
    %v981 = vadd.f32 %v816, %v933
    %v982 = vadd.f32 %v817, %v938
    %v983 = vadd.f32 %v818, %v941
    %v984 = vadd.f32 %v819, %v946
    %v985 = vadd.f32 %v820, %v949
    %v986 = vadd.f32 %v821, %v954
    %v987 = vadd.f32 %v822, %v957
    %v988 = vadd.f32 %v823, %v962
    %v989 = vadd.f32 %v824, %v965
    %v990 = vadd.f32 %v825, %v970
    %v991 = vadd.f32 %v826, %v973
    %v992 = vld [vmem:[%s0 + $0x4] sm:$0xe]
    %v993 = vld [vmem:[%s0 + $0x8] sm:$0xf]
    %v994 = vld [vmem:[%s0 + $0xc] sm:$0xf]
    %v995 = vld [vmem:[%s0 + $0x10] sm:$0xf]
    %v996 = vld [vmem:[%s0 + $0x14] sm:$0xf]
    %v997 = vld [vmem:[%s0 + $0x18] sm:$0xf]
    %v998 = vld [vmem:[%s0 + $0x1c] sm:$0xf]
    %v999 = vld [vmem:[%s0 + $0x20] sm:$0xf]
    %v1000 = vld [vmem:[%s0 + $0x24] sm:$0xf]
    %v1001 = vld [vmem:[%s0 + $0x28] sm:$0xf]
    %v1002 = vld [vmem:[%s0 + $0x2c] sm:$0xf]
    %v1003 = vld [vmem:[%s0 + $0x30] sm:$0xf]
    %v1004 = vld [vmem:[%s0 + $0x34] sm:$0xf]
    %v1005 = vld [vmem:[%s0 + $0x38] sm:$0xf]
    %v1006 = vld [vmem:[%s0 + $0x3c] sm:$0xf]
    %v1007 = vld [vmem:[%s0 + $0x40] sm:$0xf]
    %v1008 = vld [vmem:[%s0 + $0x44] sm:$0x1]
    %s1009 = scalar_lea.vmem %s1, 40
    %v1010 = vld [vmem:[%s1009] sm:$0xf]
    %v1011 = vld [vmem:[%s1009 + $0x4] sm:$0xf]
    %v1029 = vunpack.c.l.b16 %v992
    %v1030 = vunpack.c.l.b16 %v993
    %v1031 = vunpack.c.l.b16 %v994
    %v1032 = vunpack.c.l.b16 %v995
    %v1033 = vunpack.c.l.b16 %v996
    %v1034 = vunpack.c.l.b16 %v997
    %v1035 = vunpack.c.l.b16 %v998
    %v1036 = vunpack.c.l.b16 %v999
    %v1037 = vunpack.c.l.b16 %v1000
    %v1038 = vunpack.c.l.b16 %v1001
    %v1039 = vunpack.c.l.b16 %v1002
    %v1040 = vunpack.c.l.b16 %v1003
    %v1041 = vunpack.c.l.b16 %v1004
    %v1042 = vunpack.c.l.b16 %v1005
    %v1043 = vunpack.c.l.b16 %v1006
    %v1044 = vunpack.c.l.b16 %v1007
    %v1045 = vunpack.c.l.b16 %v1008
    %v1046 = vpack.c.b16 %v1030, %v1029
    %v1047 = vpack.c.b16 %v1032, %v1031
    %v1048 = vpack.c.b16 %v1034, %v1033
    %v1049 = vpack.c.b16 %v1036, %v1035
    %v1050 = vpack.c.b16 %v1038, %v1037
    %v1051 = vpack.c.b16 %v1040, %v1039
    %v1052 = vpack.c.b16 %v1042, %v1041
    %v1053 = vpack.c.b16 %v1044, %v1043
    %v1054 = vpack.c.b16 %v1045, %v1045
    %vm1055 = vsmask.f32 6400
    %v1057 = vshrl.u32 %v1046, 16
    %v1059 = vrot.slane %v1057, 1
    %v1060 = vshll.u32 %v1046, 16
    %v1062 = vrot.slane %v1060, 2
    %v1063 = vor.u32 %v1059, %v1062
    %v1065 = vshrl.u32 %v1047, 16
    %v1067 = vrot.slane %v1065, 1
    %v1068 = vshll.u32 %v1047, 16
    %v1070 = vrot.slane %v1068, 2
    %v1071 = vor.u32 %v1067, %v1070
    %v1072 = vsel %vm1055, %v1063, %v1071
    %v1074 = vshrl.u32 %v1048, 16
    %v1076 = vrot.slane %v1074, 1
    %v1077 = vshll.u32 %v1048, 16
    %v1079 = vrot.slane %v1077, 2
    %v1080 = vor.u32 %v1076, %v1079
    %v1081 = vsel %vm1055, %v1071, %v1080
    %v1083 = vshrl.u32 %v1049, 16
    %v1085 = vrot.slane %v1083, 1
    %v1086 = vshll.u32 %v1049, 16
    %v1088 = vrot.slane %v1086, 2
    %v1089 = vor.u32 %v1085, %v1088
    %v1090 = vsel %vm1055, %v1080, %v1089
    %v1092 = vshrl.u32 %v1050, 16
    %v1094 = vrot.slane %v1092, 1
    %v1095 = vshll.u32 %v1050, 16
    %v1097 = vrot.slane %v1095, 2
    %v1098 = vor.u32 %v1094, %v1097
    %v1099 = vsel %vm1055, %v1089, %v1098
    %v1101 = vshrl.u32 %v1051, 16
    %v1103 = vrot.slane %v1101, 1
    %v1104 = vshll.u32 %v1051, 16
    %v1106 = vrot.slane %v1104, 2
    %v1107 = vor.u32 %v1103, %v1106
    %v1108 = vsel %vm1055, %v1098, %v1107
    %v1110 = vshrl.u32 %v1052, 16
    %v1112 = vrot.slane %v1110, 1
    %v1113 = vshll.u32 %v1052, 16
    %v1115 = vrot.slane %v1113, 2
    %v1116 = vor.u32 %v1112, %v1115
    %v1117 = vsel %vm1055, %v1107, %v1116
    %v1119 = vshrl.u32 %v1053, 16
    %v1121 = vrot.slane %v1119, 1
    %v1122 = vshll.u32 %v1053, 16
    %v1124 = vrot.slane %v1122, 2
    %v1125 = vor.u32 %v1121, %v1124
    %v1126 = vsel %vm1055, %v1116, %v1125
    %v1128 = vshll.u32 %v1054, 16
    %v1130 = vrot.slane %v1128, 2
    %v1131 = vsel %vm1055, %v1125, %v1130
    %v1134 = vunpack.c.l.b16 %v1010
    %v1135 = vunpack.c.l.b16 %v1011
    %v1136 = vpack.c.b16 %v1135, %v1134
    %v1139 = vsel %vm151, %v1072, 0
    %v1142 = vsel %vm151, %v1081, 0
    %v1145 = vsel %vm151, %v1090, 0
    %v1148 = vsel %vm151, %v1099, 0
    %v1151 = vsel %vm151, %v1108, 0
    %v1154 = vsel %vm151, %v1117, 0
    %v1157 = vsel %vm151, %v1126, 0
    %v1160 = vsel %vm151, %v1131, 0
    %1162 = vmatprep.subr.bf16.mxu0 0
    %1163 = vmatpush1.bf16.msra.mxu0 %v1136
    %1164 = vmatprep.subr.bf16.mxu0 0
    %1165 = vmatpush1.bf16.msra.mxu0 0
    %1166 = vmatprep.subr.bf16.mxu0 0
    %1167 = vmatpush1.bf16.msra.mxu0 0
    %1168 = vmatprep.subr.bf16.mxu0 0
    %1169 = vmatpush1.bf16.msra.mxu0 0
    %1170 = vmatprep.subr.bf16.mxu0 0
    %1171 = vmatpush1.bf16.msra.mxu0 0
    %1172 = vmatprep.subr.bf16.mxu0 0
    %1173 = vmatpush1.bf16.msra.mxu0 0
    %1174 = vmatprep.subr.bf16.mxu0 0
    %1175 = vmatpush1.bf16.msra.mxu0 0
    %1176 = vmatprep.subr.bf16.mxu0 0
    %1177 = vmatpush1.bf16.msra.mxu0 0
    %1178 = vmatprep.subr.bf16.mxu0 0
    %1179 = vmatpush1.bf16.msra.mxu0 0
    %1180 = vmatprep.subr.bf16.mxu0 0
    %1181 = vmatpush1.bf16.msra.mxu0 0
    %1182 = vmatprep.subr.bf16.mxu0 0
    %1183 = vmatpush1.bf16.msra.mxu0 0
    %1184 = vmatprep.subr.bf16.mxu0 0
    %1185 = vmatpush1.bf16.msra.mxu0 0
    %1186 = vmatprep.subr.bf16.mxu0 0
    %1187 = vmatpush1.bf16.msra.mxu0 0
    %1188 = vmatprep.subr.bf16.mxu0 0
    %1189 = vmatpush1.bf16.msra.mxu0 0
    %1190 = vmatprep.subr.bf16.mxu0 0
    %1191 = vmatpush1.bf16.msra.mxu0 0
    %1192 = vmatprep.subr.bf16.mxu0 0
    %1193 = vmatpush1.bf16.msra.mxu0 0
    %1194 = vmatprep.mubr.bf16.mxu0 0
    %1195 = vmatmul.mubr.bf16.gmra.mrb[0].mxu0 %v1139
    %v1196 = vpop.f32.mrb[0].mxu0
    %v1197 = vadd.f32 0.0, %v1196
    %v1198 = vpop.f32.mrb[0].mxu0
    %v1199 = vpop.f32.mrb[0].mxu0
    %v1200 = vadd.f32 0.0, %v1199
    %v1201 = vpop.f32.mrb[0].mxu0
    %1202 = vmatprep.mubr.bf16.mxu0 0
    %1203 = vmatmul.mubr.bf16.gmra.mrb[0].mxu0 %v1142
    %v1204 = vpop.f32.mrb[0].mxu0
    %v1205 = vadd.f32 0.0, %v1204
    %v1206 = vpop.f32.mrb[0].mxu0
    %v1207 = vpop.f32.mrb[0].mxu0
    %v1208 = vadd.f32 0.0, %v1207
    %v1209 = vpop.f32.mrb[0].mxu0
    %1210 = vmatprep.mubr.bf16.mxu0 0
    %1211 = vmatmul.mubr.bf16.gmra.mrb[0].mxu0 %v1145
    %v1212 = vpop.f32.mrb[0].mxu0
    %v1213 = vadd.f32 0.0, %v1212
    %v1214 = vpop.f32.mrb[0].mxu0
    %v1215 = vpop.f32.mrb[0].mxu0
    %v1216 = vadd.f32 0.0, %v1215
    %v1217 = vpop.f32.mrb[0].mxu0
    %1218 = vmatprep.mubr.bf16.mxu0 0
    %1219 = vmatmul.mubr.bf16.gmra.mrb[0].mxu0 %v1148
    %v1220 = vpop.f32.mrb[0].mxu0
    %v1221 = vadd.f32 0.0, %v1220
    %v1222 = vpop.f32.mrb[0].mxu0
    %v1223 = vpop.f32.mrb[0].mxu0
    %v1224 = vadd.f32 0.0, %v1223
    %v1225 = vpop.f32.mrb[0].mxu0
    %1226 = vmatprep.mubr.bf16.mxu0 0
    %1227 = vmatmul.mubr.bf16.gmra.mrb[0].mxu0 %v1151
    %v1228 = vpop.f32.mrb[0].mxu0
    %v1229 = vadd.f32 0.0, %v1228
    %v1230 = vpop.f32.mrb[0].mxu0
    %v1231 = vpop.f32.mrb[0].mxu0
    %v1232 = vadd.f32 0.0, %v1231
    %v1233 = vpop.f32.mrb[0].mxu0
    %1234 = vmatprep.mubr.bf16.mxu0 0
    %1235 = vmatmul.mubr.bf16.gmra.mrb[0].mxu0 %v1154
    %v1236 = vpop.f32.mrb[0].mxu0
    %v1237 = vadd.f32 0.0, %v1236
    %v1238 = vpop.f32.mrb[0].mxu0
    %v1239 = vpop.f32.mrb[0].mxu0
    %v1240 = vadd.f32 0.0, %v1239
    %v1241 = vpop.f32.mrb[0].mxu0
    %1242 = vmatprep.mubr.bf16.mxu0 0
    %1243 = vmatmul.mubr.bf16.gmra.mrb[0].mxu0 %v1157
    %v1244 = vpop.f32.mrb[0].mxu0
    %v1245 = vadd.f32 0.0, %v1244
    %v1246 = vpop.f32.mrb[0].mxu0
    %v1247 = vpop.f32.mrb[0].mxu0
    %v1248 = vadd.f32 0.0, %v1247
    %v1249 = vpop.f32.mrb[0].mxu0
    %1250 = vmatprep.mubr.bf16.mxu0 0
    %1251 = vmatmul.mubr.bf16.gmra.mrb[0].mxu0 %v1160
    %v1252 = vpop.f32.mrb[0].mxu0
    %v1253 = vadd.f32 0.0, %v1252
    %v1254 = vpop.f32.mrb[0].mxu0
    %v1255 = vpop.f32.mrb[0].mxu0
    %v1256 = vadd.f32 0.0, %v1255
    %v1257 = vpop.f32.mrb[0].mxu0
    %1258 = vdwg.mxu0
    %v1259 = vadd.f32 %v976, %v1197
    %v1260 = vadd.f32 %v977, %v1200
    %v1261 = vadd.f32 %v978, %v1205
    %v1262 = vadd.f32 %v979, %v1208
    %v1263 = vadd.f32 %v980, %v1213
    %v1264 = vadd.f32 %v981, %v1216
    %v1265 = vadd.f32 %v982, %v1221
    %v1266 = vadd.f32 %v983, %v1224
    %v1267 = vadd.f32 %v984, %v1229
    %v1268 = vadd.f32 %v985, %v1232
    %v1269 = vadd.f32 %v986, %v1237
    %v1270 = vadd.f32 %v987, %v1240
    %v1271 = vadd.f32 %v988, %v1245
    %v1272 = vadd.f32 %v989, %v1248
    %v1273 = vadd.f32 %v990, %v1253
    %v1274 = vadd.f32 %v991, %v1256
    %v1275 = vld [vmem:[%s0 + $0x8] sm:$0xe]
    %v1276 = vld [vmem:[%s0 + $0x44] sm:$0xf]
    %s1277 = scalar_lea.vmem %s1, 48
    %v1278 = vld [vmem:[%s1277] sm:$0xf]
    %v1279 = vld [vmem:[%s1277 + $0x4] sm:$0xf]
    %v1282 = vunpack.c.l.b16 %v1275
    %v1283 = vunpack.c.l.b16 %v1276
    %v1284 = vpack.c.b16 %v1031, %v1282
    %v1285 = vpack.c.b16 %v1033, %v1032
    %v1286 = vpack.c.b16 %v1035, %v1034
    %v1287 = vpack.c.b16 %v1037, %v1036
    %v1288 = vpack.c.b16 %v1039, %v1038
    %v1289 = vpack.c.b16 %v1041, %v1040
    %v1290 = vpack.c.b16 %v1043, %v1042
    %v1291 = vpack.c.b16 %v1283, %v1044
    %v1292 = vrot.slane %v1284, 1
    %v1293 = vrot.slane %v1285, 1
    %v1294 = vsel %vm403, %v1292, %v1293
    %v1295 = vrot.slane %v1286, 1
    %v1296 = vsel %vm403, %v1293, %v1295
    %v1297 = vrot.slane %v1287, 1
    %v1298 = vsel %vm403, %v1295, %v1297
    %v1299 = vrot.slane %v1288, 1
    %v1300 = vsel %vm403, %v1297, %v1299
    %v1301 = vrot.slane %v1289, 1
    %v1302 = vsel %vm403, %v1299, %v1301
    %v1303 = vrot.slane %v1290, 1
    %v1304 = vsel %vm403, %v1301, %v1303
    %v1305 = vrot.slane %v1291, 1
    %v1306 = vsel %vm403, %v1303, %v1305
    %v1309 = vunpack.c.l.b16 %v1278
    %v1310 = vunpack.c.l.b16 %v1279
    %v1311 = vpack.c.b16 %v1310, %v1309
    %v1314 = vsel %vm151, %v1294, 0
    %v1317 = vsel %vm151, %v1296, 0
    %v1320 = vsel %vm151, %v1298, 0
    %v1323 = vsel %vm151, %v1300, 0
    %v1326 = vsel %vm151, %v1302, 0
    %v1329 = vsel %vm151, %v1304, 0
    %v1332 = vsel %vm151, %v1306, 0
    %v1335 = vsel %vm151, %v1305, 0
    %1337 = vmatprep.subr.bf16.mxu0 0
    %1338 = vmatpush1.bf16.msra.mxu0 %v1311
    %1339 = vmatprep.subr.bf16.mxu0 0
    %1340 = vmatpush1.bf16.msra.mxu0 0
    %1341 = vmatprep.subr.bf16.mxu0 0
    %1342 = vmatpush1.bf16.msra.mxu0 0
    %1343 = vmatprep.subr.bf16.mxu0 0
    %1344 = vmatpush1.bf16.msra.mxu0 0
    %1345 = vmatprep.subr.bf16.mxu0 0
    %1346 = vmatpush1.bf16.msra.mxu0 0
    %1347 = vmatprep.subr.bf16.mxu0 0
    %1348 = vmatpush1.bf16.msra.mxu0 0
    %1349 = vmatprep.subr.bf16.mxu0 0
    %1350 = vmatpush1.bf16.msra.mxu0 0
    %1351 = vmatprep.subr.bf16.mxu0 0
    %1352 = vmatpush1.bf16.msra.mxu0 0
    %1353 = vmatprep.subr.bf16.mxu0 0
    %1354 = vmatpush1.bf16.msra.mxu0 0
    %1355 = vmatprep.subr.bf16.mxu0 0
    %1356 = vmatpush1.bf16.msra.mxu0 0
    %1357 = vmatprep.subr.bf16.mxu0 0
    %1358 = vmatpush1.bf16.msra.mxu0 0
    %1359 = vmatprep.subr.bf16.mxu0 0
    %1360 = vmatpush1.bf16.msra.mxu0 0
    %1361 = vmatprep.subr.bf16.mxu0 0
    %1362 = vmatpush1.bf16.msra.mxu0 0
    %1363 = vmatprep.subr.bf16.mxu0 0
    %1364 = vmatpush1.bf16.msra.mxu0 0
    %1365 = vmatprep.subr.bf16.mxu0 0
    %1366 = vmatpush1.bf16.msra.mxu0 0
    %1367 = vmatprep.subr.bf16.mxu0 0
    %1368 = vmatpush1.bf16.msra.mxu0 0
    %1369 = vmatprep.mubr.bf16.mxu0 0
    %1370 = vmatmul.mubr.bf16.gmra.mrb[0].mxu0 %v1314
    %v1371 = vpop.f32.mrb[0].mxu0
    %v1372 = vadd.f32 0.0, %v1371
    %v1373 = vpop.f32.mrb[0].mxu0
    %v1374 = vpop.f32.mrb[0].mxu0
    %v1375 = vadd.f32 0.0, %v1374
    %v1376 = vpop.f32.mrb[0].mxu0
    %1377 = vmatprep.mubr.bf16.mxu0 0
    %1378 = vmatmul.mubr.bf16.gmra.mrb[0].mxu0 %v1317
    %v1379 = vpop.f32.mrb[0].mxu0
    %v1380 = vadd.f32 0.0, %v1379
    %v1381 = vpop.f32.mrb[0].mxu0
    %v1382 = vpop.f32.mrb[0].mxu0
    %v1383 = vadd.f32 0.0, %v1382
    %v1384 = vpop.f32.mrb[0].mxu0
    %1385 = vmatprep.mubr.bf16.mxu0 0
    %1386 = vmatmul.mubr.bf16.gmra.mrb[0].mxu0 %v1320
    %v1387 = vpop.f32.mrb[0].mxu0
    %v1388 = vadd.f32 0.0, %v1387
    %v1389 = vpop.f32.mrb[0].mxu0
    %v1390 = vpop.f32.mrb[0].mxu0
    %v1391 = vadd.f32 0.0, %v1390
    %v1392 = vpop.f32.mrb[0].mxu0
    %1393 = vmatprep.mubr.bf16.mxu0 0
    %1394 = vmatmul.mubr.bf16.gmra.mrb[0].mxu0 %v1323
    %v1395 = vpop.f32.mrb[0].mxu0
    %v1396 = vadd.f32 0.0, %v1395
    %v1397 = vpop.f32.mrb[0].mxu0
    %v1398 = vpop.f32.mrb[0].mxu0
    %v1399 = vadd.f32 0.0, %v1398
    %v1400 = vpop.f32.mrb[0].mxu0
    %1401 = vmatprep.mubr.bf16.mxu0 0
    %1402 = vmatmul.mubr.bf16.gmra.mrb[0].mxu0 %v1326
    %v1403 = vpop.f32.mrb[0].mxu0
    %v1404 = vadd.f32 0.0, %v1403
    %v1405 = vpop.f32.mrb[0].mxu0
    %v1406 = vpop.f32.mrb[0].mxu0
    %v1407 = vadd.f32 0.0, %v1406
    %v1408 = vpop.f32.mrb[0].mxu0
    %1409 = vmatprep.mubr.bf16.mxu0 0
    %1410 = vmatmul.mubr.bf16.gmra.mrb[0].mxu0 %v1329
    %v1411 = vpop.f32.mrb[0].mxu0
    %v1412 = vadd.f32 0.0, %v1411
    %v1413 = vpop.f32.mrb[0].mxu0
    %v1414 = vpop.f32.mrb[0].mxu0
    %v1415 = vadd.f32 0.0, %v1414
    %v1416 = vpop.f32.mrb[0].mxu0
    %1417 = vmatprep.mubr.bf16.mxu0 0
    %1418 = vmatmul.mubr.bf16.gmra.mrb[0].mxu0 %v1332
    %v1419 = vpop.f32.mrb[0].mxu0
    %v1420 = vadd.f32 0.0, %v1419
    %v1421 = vpop.f32.mrb[0].mxu0
    %v1422 = vpop.f32.mrb[0].mxu0
    %v1423 = vadd.f32 0.0, %v1422
    %v1424 = vpop.f32.mrb[0].mxu0
    %1425 = vmatprep.mubr.bf16.mxu0 0
    %1426 = vmatmul.mubr.bf16.gmra.mrb[0].mxu0 %v1335
    %v1427 = vpop.f32.mrb[0].mxu0
    %v1428 = vadd.f32 0.0, %v1427
    %v1429 = vpop.f32.mrb[0].mxu0
    %v1430 = vpop.f32.mrb[0].mxu0
    %v1431 = vadd.f32 0.0, %v1430
    %v1432 = vpop.f32.mrb[0].mxu0
    %1433 = vdwg.mxu0
    %v1434 = vadd.f32 %v1259, %v1372
    %v1435 = vadd.f32 %v1260, %v1375
    %v1436 = vadd.f32 %v1261, %v1380
    %v1437 = vadd.f32 %v1262, %v1383
    %v1438 = vadd.f32 %v1263, %v1388
    %v1439 = vadd.f32 %v1264, %v1391
    %v1440 = vadd.f32 %v1265, %v1396
    %v1441 = vadd.f32 %v1266, %v1399
    %v1442 = vadd.f32 %v1267, %v1404
    %v1443 = vadd.f32 %v1268, %v1407
    %v1444 = vadd.f32 %v1269, %v1412
    %v1445 = vadd.f32 %v1270, %v1415
    %v1446 = vadd.f32 %v1271, %v1420
    %v1447 = vadd.f32 %v1272, %v1423
    %v1448 = vadd.f32 %v1273, %v1428
    %v1449 = vadd.f32 %v1274, %v1431
    %v1450 = vld [vmem:[%s0 + $0x8] sm:$0xe]
    %v1451 = vld [vmem:[%s0 + $0xc] sm:$0xf]
    %v1452 = vld [vmem:[%s0 + $0x10] sm:$0xf]
    %v1453 = vld [vmem:[%s0 + $0x14] sm:$0xf]
    %v1454 = vld [vmem:[%s0 + $0x18] sm:$0xf]
    %v1455 = vld [vmem:[%s0 + $0x1c] sm:$0xf]
    %v1456 = vld [vmem:[%s0 + $0x20] sm:$0xf]
    %v1457 = vld [vmem:[%s0 + $0x24] sm:$0xf]
    %v1458 = vld [vmem:[%s0 + $0x28] sm:$0xf]
    %v1459 = vld [vmem:[%s0 + $0x2c] sm:$0xf]
    %v1460 = vld [vmem:[%s0 + $0x30] sm:$0xf]
    %v1461 = vld [vmem:[%s0 + $0x34] sm:$0xf]
    %v1462 = vld [vmem:[%s0 + $0x38] sm:$0xf]
    %v1463 = vld [vmem:[%s0 + $0x3c] sm:$0xf]
    %v1464 = vld [vmem:[%s0 + $0x40] sm:$0xf]
    %v1465 = vld [vmem:[%s0 + $0x44] sm:$0xf]
    %v1466 = vld [vmem:[%s0 + $0x48] sm:$0x1]
    %s1467 = scalar_lea.vmem %s1, 56
    %v1468 = vld [vmem:[%s1467] sm:$0xf]
    %v1469 = vld [vmem:[%s1467 + $0x4] sm:$0xf]
    %v1487 = vunpack.c.l.b16 %v1450
    %v1488 = vunpack.c.l.b16 %v1451
    %v1489 = vunpack.c.l.b16 %v1452
    %v1490 = vunpack.c.l.b16 %v1453
    %v1491 = vunpack.c.l.b16 %v1454
    %v1492 = vunpack.c.l.b16 %v1455
    %v1493 = vunpack.c.l.b16 %v1456
    %v1494 = vunpack.c.l.b16 %v1457
    %v1495 = vunpack.c.l.b16 %v1458
    %v1496 = vunpack.c.l.b16 %v1459
    %v1497 = vunpack.c.l.b16 %v1460
    %v1498 = vunpack.c.l.b16 %v1461
    %v1499 = vunpack.c.l.b16 %v1462
    %v1500 = vunpack.c.l.b16 %v1463
    %v1501 = vunpack.c.l.b16 %v1464
    %v1502 = vunpack.c.l.b16 %v1465
    %v1503 = vunpack.c.l.b16 %v1466
    %v1504 = vpack.c.b16 %v1488, %v1487
    %v1505 = vpack.c.b16 %v1490, %v1489
    %v1506 = vpack.c.b16 %v1492, %v1491
    %v1507 = vpack.c.b16 %v1494, %v1493
    %v1508 = vpack.c.b16 %v1496, %v1495
    %v1509 = vpack.c.b16 %v1498, %v1497
    %v1510 = vpack.c.b16 %v1500, %v1499
    %v1511 = vpack.c.b16 %v1502, %v1501
    %v1512 = vpack.c.b16 %v1503, %v1503
    %v1514 = vshrl.u32 %v1504, 16
    %v1516 = vrot.slane %v1514, 1
    %v1517 = vshll.u32 %v1504, 16
    %v1519 = vrot.slane %v1517, 2
    %v1520 = vor.u32 %v1516, %v1519
    %v1522 = vshrl.u32 %v1505, 16
    %v1524 = vrot.slane %v1522, 1
    %v1525 = vshll.u32 %v1505, 16
    %v1527 = vrot.slane %v1525, 2
    %v1528 = vor.u32 %v1524, %v1527
    %v1529 = vsel %vm1055, %v1520, %v1528
    %v1531 = vshrl.u32 %v1506, 16
    %v1533 = vrot.slane %v1531, 1
    %v1534 = vshll.u32 %v1506, 16
    %v1536 = vrot.slane %v1534, 2
    %v1537 = vor.u32 %v1533, %v1536
    %v1538 = vsel %vm1055, %v1528, %v1537
    %v1540 = vshrl.u32 %v1507, 16
    %v1542 = vrot.slane %v1540, 1
    %v1543 = vshll.u32 %v1507, 16
    %v1545 = vrot.slane %v1543, 2
    %v1546 = vor.u32 %v1542, %v1545
    %v1547 = vsel %vm1055, %v1537, %v1546
    %v1549 = vshrl.u32 %v1508, 16
    %v1551 = vrot.slane %v1549, 1
    %v1552 = vshll.u32 %v1508, 16
    %v1554 = vrot.slane %v1552, 2
    %v1555 = vor.u32 %v1551, %v1554
    %v1556 = vsel %vm1055, %v1546, %v1555
    %v1558 = vshrl.u32 %v1509, 16
    %v1560 = vrot.slane %v1558, 1
    %v1561 = vshll.u32 %v1509, 16
    %v1563 = vrot.slane %v1561, 2
    %v1564 = vor.u32 %v1560, %v1563
    %v1565 = vsel %vm1055, %v1555, %v1564
    %v1567 = vshrl.u32 %v1510, 16
    %v1569 = vrot.slane %v1567, 1
    %v1570 = vshll.u32 %v1510, 16
    %v1572 = vrot.slane %v1570, 2
    %v1573 = vor.u32 %v1569, %v1572
    %v1574 = vsel %vm1055, %v1564, %v1573
    %v1576 = vshrl.u32 %v1511, 16
    %v1578 = vrot.slane %v1576, 1
    %v1579 = vshll.u32 %v1511, 16
    %v1581 = vrot.slane %v1579, 2
    %v1582 = vor.u32 %v1578, %v1581
    %v1583 = vsel %vm1055, %v1573, %v1582
    %v1585 = vshll.u32 %v1512, 16
    %v1587 = vrot.slane %v1585, 2
    %v1588 = vsel %vm1055, %v1582, %v1587
    %v1591 = vunpack.c.l.b16 %v1468
    %v1592 = vunpack.c.l.b16 %v1469
    %v1593 = vpack.c.b16 %v1592, %v1591
    %v1596 = vsel %vm151, %v1529, 0
    %v1599 = vsel %vm151, %v1538, 0
    %v1602 = vsel %vm151, %v1547, 0
    %v1605 = vsel %vm151, %v1556, 0
    %v1608 = vsel %vm151, %v1565, 0
    %v1611 = vsel %vm151, %v1574, 0
    %v1614 = vsel %vm151, %v1583, 0
    %v1617 = vsel %vm151, %v1588, 0
    %1619 = vmatprep.subr.bf16.mxu0 0
    %1620 = vmatpush1.bf16.msra.mxu0 %v1593
    %1621 = vmatprep.subr.bf16.mxu0 0
    %1622 = vmatpush1.bf16.msra.mxu0 0
    %1623 = vmatprep.subr.bf16.mxu0 0
    %1624 = vmatpush1.bf16.msra.mxu0 0
    %1625 = vmatprep.subr.bf16.mxu0 0
    %1626 = vmatpush1.bf16.msra.mxu0 0
    %1627 = vmatprep.subr.bf16.mxu0 0
    %1628 = vmatpush1.bf16.msra.mxu0 0
    %1629 = vmatprep.subr.bf16.mxu0 0
    %1630 = vmatpush1.bf16.msra.mxu0 0
    %1631 = vmatprep.subr.bf16.mxu0 0
    %1632 = vmatpush1.bf16.msra.mxu0 0
    %1633 = vmatprep.subr.bf16.mxu0 0
    %1634 = vmatpush1.bf16.msra.mxu0 0
    %1635 = vmatprep.subr.bf16.mxu0 0
    %1636 = vmatpush1.bf16.msra.mxu0 0
    %1637 = vmatprep.subr.bf16.mxu0 0
    %1638 = vmatpush1.bf16.msra.mxu0 0
    %1639 = vmatprep.subr.bf16.mxu0 0
    %1640 = vmatpush1.bf16.msra.mxu0 0
    %1641 = vmatprep.subr.bf16.mxu0 0
    %1642 = vmatpush1.bf16.msra.mxu0 0
    %1643 = vmatprep.subr.bf16.mxu0 0
    %1644 = vmatpush1.bf16.msra.mxu0 0
    %1645 = vmatprep.subr.bf16.mxu0 0
    %1646 = vmatpush1.bf16.msra.mxu0 0
    %1647 = vmatprep.subr.bf16.mxu0 0
    %1648 = vmatpush1.bf16.msra.mxu0 0
    %1649 = vmatprep.subr.bf16.mxu0 0
    %1650 = vmatpush1.bf16.msra.mxu0 0
    %1651 = vmatprep.mubr.bf16.mxu0 0
    %1652 = vmatmul.mubr.bf16.gmra.mrb[0].mxu0 %v1596
    %v1653 = vpop.f32.mrb[0].mxu0
    %v1654 = vadd.f32 0.0, %v1653
    %v1655 = vpop.f32.mrb[0].mxu0
    %v1656 = vpop.f32.mrb[0].mxu0
    %v1657 = vadd.f32 0.0, %v1656
    %v1658 = vpop.f32.mrb[0].mxu0
    %1659 = vmatprep.mubr.bf16.mxu0 0
    %1660 = vmatmul.mubr.bf16.gmra.mrb[0].mxu0 %v1599
    %v1661 = vpop.f32.mrb[0].mxu0
    %v1662 = vadd.f32 0.0, %v1661
    %v1663 = vpop.f32.mrb[0].mxu0
    %v1664 = vpop.f32.mrb[0].mxu0
    %v1665 = vadd.f32 0.0, %v1664
    %v1666 = vpop.f32.mrb[0].mxu0
    %1667 = vmatprep.mubr.bf16.mxu0 0
    %1668 = vmatmul.mubr.bf16.gmra.mrb[0].mxu0 %v1602
    %v1669 = vpop.f32.mrb[0].mxu0
    %v1670 = vadd.f32 0.0, %v1669
    %v1671 = vpop.f32.mrb[0].mxu0
    %v1672 = vpop.f32.mrb[0].mxu0
    %v1673 = vadd.f32 0.0, %v1672
    %v1674 = vpop.f32.mrb[0].mxu0
    %1675 = vmatprep.mubr.bf16.mxu0 0
    %1676 = vmatmul.mubr.bf16.gmra.mrb[0].mxu0 %v1605
    %v1677 = vpop.f32.mrb[0].mxu0
    %v1678 = vadd.f32 0.0, %v1677
    %v1679 = vpop.f32.mrb[0].mxu0
    %v1680 = vpop.f32.mrb[0].mxu0
    %v1681 = vadd.f32 0.0, %v1680
    %v1682 = vpop.f32.mrb[0].mxu0
    %1683 = vmatprep.mubr.bf16.mxu0 0
    %1684 = vmatmul.mubr.bf16.gmra.mrb[0].mxu0 %v1608
    %v1685 = vpop.f32.mrb[0].mxu0
    %v1686 = vadd.f32 0.0, %v1685
    %v1687 = vpop.f32.mrb[0].mxu0
    %v1688 = vpop.f32.mrb[0].mxu0
    %v1689 = vadd.f32 0.0, %v1688
    %v1690 = vpop.f32.mrb[0].mxu0
    %1691 = vmatprep.mubr.bf16.mxu0 0
    %1692 = vmatmul.mubr.bf16.gmra.mrb[0].mxu0 %v1611
    %v1693 = vpop.f32.mrb[0].mxu0
    %v1694 = vadd.f32 0.0, %v1693
    %v1695 = vpop.f32.mrb[0].mxu0
    %v1696 = vpop.f32.mrb[0].mxu0
    %v1697 = vadd.f32 0.0, %v1696
    %v1698 = vpop.f32.mrb[0].mxu0
    %1699 = vmatprep.mubr.bf16.mxu0 0
    %1700 = vmatmul.mubr.bf16.gmra.mrb[0].mxu0 %v1614
    %v1701 = vpop.f32.mrb[0].mxu0
    %v1702 = vadd.f32 0.0, %v1701
    %v1703 = vpop.f32.mrb[0].mxu0
    %v1704 = vpop.f32.mrb[0].mxu0
    %v1705 = vadd.f32 0.0, %v1704
    %v1706 = vpop.f32.mrb[0].mxu0
    %1707 = vmatprep.mubr.bf16.mxu0 0
    %1708 = vmatmul.mubr.bf16.gmra.mrb[0].mxu0 %v1617
    %v1709 = vpop.f32.mrb[0].mxu0
    %v1710 = vadd.f32 0.0, %v1709
    %v1711 = vpop.f32.mrb[0].mxu0
    %v1712 = vpop.f32.mrb[0].mxu0
    %v1713 = vadd.f32 0.0, %v1712
    %v1714 = vpop.f32.mrb[0].mxu0
    %1715 = vdwg.mxu0
    %v1716 = vadd.f32 %v1434, %v1654
    %v1717 = vadd.f32 %v1435, %v1657
    %v1718 = vadd.f32 %v1436, %v1662
    %v1719 = vadd.f32 %v1437, %v1665
    %v1720 = vadd.f32 %v1438, %v1670
    %v1721 = vadd.f32 %v1439, %v1673
    %v1722 = vadd.f32 %v1440, %v1678
    %v1723 = vadd.f32 %v1441, %v1681
    %v1724 = vadd.f32 %v1442, %v1686
    %v1725 = vadd.f32 %v1443, %v1689
    %v1726 = vadd.f32 %v1444, %v1694
    %v1727 = vadd.f32 %v1445, %v1697
    %v1728 = vadd.f32 %v1446, %v1702
    %v1729 = vadd.f32 %v1447, %v1705
    %v1730 = vadd.f32 %v1448, %v1710
    %v1731 = vadd.f32 %v1449, %v1713
    %v1732 = vld [vmem:[%s0 + $0x8] sm:$0xc]
    %s1733 = scalar_lea.vmem %s1, 64
    %v1734 = vld [vmem:[%s1733] sm:$0xf]
    %v1735 = vld [vmem:[%s1733 + $0x4] sm:$0xf]
    %v1737 = vunpack.c.l.b16 %v1732
    %v1738 = vpack.c.b16 %v1488, %v1737
    %vm1739 = vcmask 1045504
    %v1740 = vrot.slane %v1738, 2
    %v1741 = vrot.slane %v1505, 2
    %v1742 = vsel %vm1739, %v1740, %v1741
    %v1743 = vrot.slane %v1506, 2
    %v1744 = vsel %vm1739, %v1741, %v1743
    %v1745 = vrot.slane %v1507, 2
    %v1746 = vsel %vm1739, %v1743, %v1745
    %v1747 = vrot.slane %v1508, 2
    %v1748 = vsel %vm1739, %v1745, %v1747
    %v1749 = vrot.slane %v1509, 2
    %v1750 = vsel %vm1739, %v1747, %v1749
    %v1751 = vrot.slane %v1510, 2
    %v1752 = vsel %vm1739, %v1749, %v1751
    %v1753 = vrot.slane %v1511, 2
    %v1754 = vsel %vm1739, %v1751, %v1753
    %v1755 = vrot.slane %v1512, 2
    %v1756 = vsel %vm1739, %v1753, %v1755
    %v1759 = vunpack.c.l.b16 %v1734
    %v1760 = vunpack.c.l.b16 %v1735
    %v1761 = vpack.c.b16 %v1760, %v1759
    %v1764 = vsel %vm151, %v1742, 0
    %v1767 = vsel %vm151, %v1744, 0
    %v1770 = vsel %vm151, %v1746, 0
    %v1773 = vsel %vm151, %v1748, 0
    %v1776 = vsel %vm151, %v1750, 0
    %v1779 = vsel %vm151, %v1752, 0
    %v1782 = vsel %vm151, %v1754, 0
    %v1785 = vsel %vm151, %v1756, 0
    %1787 = vmatprep.subr.bf16.mxu0 0
    %1788 = vmatpush1.bf16.msra.mxu0 %v1761
    %1789 = vmatprep.subr.bf16.mxu0 0
    %1790 = vmatpush1.bf16.msra.mxu0 0
    %1791 = vmatprep.subr.bf16.mxu0 0
    %1792 = vmatpush1.bf16.msra.mxu0 0
    %1793 = vmatprep.subr.bf16.mxu0 0
    %1794 = vmatpush1.bf16.msra.mxu0 0
    %1795 = vmatprep.subr.bf16.mxu0 0
    %1796 = vmatpush1.bf16.msra.mxu0 0
    %1797 = vmatprep.subr.bf16.mxu0 0
    %1798 = vmatpush1.bf16.msra.mxu0 0
    %1799 = vmatprep.subr.bf16.mxu0 0
    %1800 = vmatpush1.bf16.msra.mxu0 0
    %1801 = vmatprep.subr.bf16.mxu0 0
    %1802 = vmatpush1.bf16.msra.mxu0 0
    %1803 = vmatprep.subr.bf16.mxu0 0
    %1804 = vmatpush1.bf16.msra.mxu0 0
    %1805 = vmatprep.subr.bf16.mxu0 0
    %1806 = vmatpush1.bf16.msra.mxu0 0
    %1807 = vmatprep.subr.bf16.mxu0 0
    %1808 = vmatpush1.bf16.msra.mxu0 0
    %1809 = vmatprep.subr.bf16.mxu0 0
    %1810 = vmatpush1.bf16.msra.mxu0 0
    %1811 = vmatprep.subr.bf16.mxu0 0
    %1812 = vmatpush1.bf16.msra.mxu0 0
    %1813 = vmatprep.subr.bf16.mxu0 0
    %1814 = vmatpush1.bf16.msra.mxu0 0
    %1815 = vmatprep.subr.bf16.mxu0 0
    %1816 = vmatpush1.bf16.msra.mxu0 0
    %1817 = vmatprep.subr.bf16.mxu0 0
    %1818 = vmatpush1.bf16.msra.mxu0 0
    %1819 = vmatprep.mubr.bf16.mxu0 0
    %1820 = vmatmul.mubr.bf16.gmra.mrb[0].mxu0 %v1764
    %v1821 = vpop.f32.mrb[0].mxu0
    %v1822 = vadd.f32 0.0, %v1821
    %v1823 = vpop.f32.mrb[0].mxu0
    %v1824 = vpop.f32.mrb[0].mxu0
    %v1825 = vadd.f32 0.0, %v1824
    %v1826 = vpop.f32.mrb[0].mxu0
    %1827 = vmatprep.mubr.bf16.mxu0 0
    %1828 = vmatmul.mubr.bf16.gmra.mrb[0].mxu0 %v1767
    %v1829 = vpop.f32.mrb[0].mxu0
    %v1830 = vadd.f32 0.0, %v1829
    %v1831 = vpop.f32.mrb[0].mxu0
    %v1832 = vpop.f32.mrb[0].mxu0
    %v1833 = vadd.f32 0.0, %v1832
    %v1834 = vpop.f32.mrb[0].mxu0
    %1835 = vmatprep.mubr.bf16.mxu0 0
    %1836 = vmatmul.mubr.bf16.gmra.mrb[0].mxu0 %v1770
    %v1837 = vpop.f32.mrb[0].mxu0
    %v1838 = vadd.f32 0.0, %v1837
    %v1839 = vpop.f32.mrb[0].mxu0
    %v1840 = vpop.f32.mrb[0].mxu0
    %v1841 = vadd.f32 0.0, %v1840
    %v1842 = vpop.f32.mrb[0].mxu0
    %1843 = vmatprep.mubr.bf16.mxu0 0
    %1844 = vmatmul.mubr.bf16.gmra.mrb[0].mxu0 %v1773
    %v1845 = vpop.f32.mrb[0].mxu0
    %v1846 = vadd.f32 0.0, %v1845
    %v1847 = vpop.f32.mrb[0].mxu0
    %v1848 = vpop.f32.mrb[0].mxu0
    %v1849 = vadd.f32 0.0, %v1848
    %v1850 = vpop.f32.mrb[0].mxu0
    %1851 = vmatprep.mubr.bf16.mxu0 0
    %1852 = vmatmul.mubr.bf16.gmra.mrb[0].mxu0 %v1776
    %v1853 = vpop.f32.mrb[0].mxu0
    %v1854 = vadd.f32 0.0, %v1853
    %v1855 = vpop.f32.mrb[0].mxu0
    %v1856 = vpop.f32.mrb[0].mxu0
    %v1857 = vadd.f32 0.0, %v1856
    %v1858 = vpop.f32.mrb[0].mxu0
    %1859 = vmatprep.mubr.bf16.mxu0 0
    %1860 = vmatmul.mubr.bf16.gmra.mrb[0].mxu0 %v1779
    %v1861 = vpop.f32.mrb[0].mxu0
    %v1862 = vadd.f32 0.0, %v1861
    %v1863 = vpop.f32.mrb[0].mxu0
    %v1864 = vpop.f32.mrb[0].mxu0
    %v1865 = vadd.f32 0.0, %v1864
    %v1866 = vpop.f32.mrb[0].mxu0
    %1867 = vmatprep.mubr.bf16.mxu0 0
    %1868 = vmatmul.mubr.bf16.gmra.mrb[0].mxu0 %v1782
    %v1869 = vpop.f32.mrb[0].mxu0
    %v1870 = vadd.f32 0.0, %v1869
    %v1871 = vpop.f32.mrb[0].mxu0
    %v1872 = vpop.f32.mrb[0].mxu0
    %v1873 = vadd.f32 0.0, %v1872
    %v1874 = vpop.f32.mrb[0].mxu0
    %1875 = vmatprep.mubr.bf16.mxu0 0
    %1876 = vmatmul.mubr.bf16.gmra.mrb[0].mxu0 %v1785
    %v1877 = vpop.f32.mrb[0].mxu0
    %v1878 = vadd.f32 0.0, %v1877
    %v1879 = vpop.f32.mrb[0].mxu0
    %v1880 = vpop.f32.mrb[0].mxu0
    %v1881 = vadd.f32 0.0, %v1880
    %v1882 = vpop.f32.mrb[0].mxu0
    %1883 = vdwg.mxu0
    %v1884 = vadd.f32 %v1716, %v1822
    %v1885 = vadd.f32 %v1717, %v1825
    %v1886 = vadd.f32 %v1718, %v1830
    %v1887 = vadd.f32 %v1719, %v1833
    %v1888 = vadd.f32 %v1720, %v1838
    %v1889 = vadd.f32 %v1721, %v1841
    %v1890 = vadd.f32 %v1722, %v1846
    %v1891 = vadd.f32 %v1723, %v1849
    %v1892 = vadd.f32 %v1724, %v1854
    %v1893 = vadd.f32 %v1725, %v1857
    %v1894 = vadd.f32 %v1726, %v1862
    %v1895 = vadd.f32 %v1727, %v1865
    %v1896 = vadd.f32 %v1728, %v1870
    %v1897 = vadd.f32 %v1729, %v1873
    %v1898 = vadd.f32 %v1730, %v1878
    %v1899 = vadd.f32 %v1731, %v1881
    %v1900 = vld [vmem:[%s2] sm:$0x1]
    %v1902 = vlaneseq
    %v1903 = vshrl.u32 %v1902, 7
    %v1904 = vsub.s32 0, %v1903
    %v1905 = vrot.slane %v1900, %v1904
    %v1907 = vmul.f32 %v1884, %v1905
    %v1908 = vmul.f32 %v1885, %v1905
    %v1909 = vmul.f32 %v1886, %v1905
    %v1910 = vmul.f32 %v1887, %v1905
    %v1911 = vmul.f32 %v1888, %v1905
    %v1912 = vmul.f32 %v1889, %v1905
    %v1913 = vmul.f32 %v1890, %v1905
    %v1914 = vmul.f32 %v1891, %v1905
    %v1915 = vmul.f32 %v1892, %v1905
    %v1916 = vmul.f32 %v1893, %v1905
    %v1917 = vmul.f32 %v1894, %v1905
    %v1918 = vmul.f32 %v1895, %v1905
    %v1919 = vmul.f32 %v1896, %v1905
    %v1920 = vmul.f32 %v1897, %v1905
    %v1921 = vmul.f32 %v1898, %v1905
    %v1922 = vmul.f32 %v1899, %v1905
    %v1923 = vld [vmem:[%s3] sm:$0x1]
    %v1925 = vlaneseq
    %v1926 = vshrl.u32 %v1925, 7
    %v1927 = vsub.s32 0, %v1926
    %v1928 = vrot.slane %v1923, %v1927
    %v1930 = vadd.f32 %v1907, %v1928
    %v1931 = vadd.f32 %v1908, %v1928
    %v1932 = vadd.f32 %v1909, %v1928
    %v1933 = vadd.f32 %v1910, %v1928
    %v1934 = vadd.f32 %v1911, %v1928
    %v1935 = vadd.f32 %v1912, %v1928
    %v1936 = vadd.f32 %v1913, %v1928
    %v1937 = vadd.f32 %v1914, %v1928
    %v1938 = vadd.f32 %v1915, %v1928
    %v1939 = vadd.f32 %v1916, %v1928
    %v1940 = vadd.f32 %v1917, %v1928
    %v1941 = vadd.f32 %v1918, %v1928
    %v1942 = vadd.f32 %v1919, %v1928
    %v1943 = vadd.f32 %v1920, %v1928
    %v1944 = vadd.f32 %v1921, %v1928
    %v1945 = vadd.f32 %v1922, %v1928
    %v1946 = vmax.f32 %v1930, 0.0
    %v1947 = vmax.f32 %v1931, 0.0
    %v1948 = vmax.f32 %v1932, 0.0
    %v1949 = vmax.f32 %v1933, 0.0
    %v1950 = vmax.f32 %v1934, 0.0
    %v1951 = vmax.f32 %v1935, 0.0
    %v1952 = vmax.f32 %v1936, 0.0
    %v1953 = vmax.f32 %v1937, 0.0
    %v1954 = vmax.f32 %v1938, 0.0
    %v1955 = vmax.f32 %v1939, 0.0
    %v1956 = vmax.f32 %v1940, 0.0
    %v1957 = vmax.f32 %v1941, 0.0
    %v1958 = vmax.f32 %v1942, 0.0
    %v1959 = vmax.f32 %v1943, 0.0
    %v1960 = vmax.f32 %v1944, 0.0
    %v1961 = vmax.f32 %v1945, 0.0
    %v1962 = vpack.c.bf16 %v1947, %v1946
    %v1963 = vpack.c.bf16 %v1949, %v1948
    %v1964 = vpack.c.bf16 %v1951, %v1950
    %v1965 = vpack.c.bf16 %v1953, %v1952
    %v1966 = vpack.c.bf16 %v1955, %v1954
    %v1967 = vpack.c.bf16 %v1957, %v1956
    %v1968 = vpack.c.bf16 %v1959, %v1958
    %v1969 = vpack.c.bf16 %v1961, %v1960
    %v1978 = vunpack.c.l.b16 %v1962
    %v1979 = vunpack.c.h.b16 %v1962
    %v1980 = vunpack.c.l.b16 %v1963
    %v1981 = vunpack.c.h.b16 %v1963
    %v1982 = vunpack.c.l.b16 %v1964
    %v1983 = vunpack.c.h.b16 %v1964
    %v1984 = vunpack.c.l.b16 %v1965
    %v1985 = vunpack.c.h.b16 %v1965
    %v1986 = vunpack.c.l.b16 %v1966
    %v1987 = vunpack.c.h.b16 %v1966
    %v1988 = vunpack.c.l.b16 %v1967
    %v1989 = vunpack.c.h.b16 %v1967
    %v1990 = vunpack.c.l.b16 %v1968
    %v1991 = vunpack.c.h.b16 %v1968
    %v1992 = vunpack.c.l.b16 %v1969
    %v1993 = vunpack.c.h.b16 %v1969
    %v1994 = vpack.c.b16 %v1978, %v1978
    %v1995 = vpack.c.b16 %v1979, %v1979
    %v1996 = vpack.c.b16 %v1980, %v1980
    %v1997 = vpack.c.b16 %v1981, %v1981
    %v1998 = vpack.c.b16 %v1982, %v1982
    %v1999 = vpack.c.b16 %v1983, %v1983
    %v2000 = vpack.c.b16 %v1984, %v1984
    %v2001 = vpack.c.b16 %v1985, %v1985
    %v2002 = vpack.c.b16 %v1986, %v1986
    %v2003 = vpack.c.b16 %v1987, %v1987
    %v2004 = vpack.c.b16 %v1988, %v1988
    %v2005 = vpack.c.b16 %v1989, %v1989
    %v2006 = vpack.c.b16 %v1990, %v1990
    %v2007 = vpack.c.b16 %v1991, %v1991
    %v2008 = vpack.c.b16 %v1992, %v1992
    %v2009 = vpack.c.b16 %v1993, %v1993
    %2026 = vst [vmem:[#allocation2] sm:$0xf] %v1994
    %2027 = vst [vmem:[#allocation2 + $0x4] sm:$0xf] %v1995
    %2028 = vst [vmem:[#allocation2 + $0x8] sm:$0xf] %v1996
    %2029 = vst [vmem:[#allocation2 + $0xc] sm:$0xf] %v1997
    %2030 = vst [vmem:[#allocation2 + $0x10] sm:$0xf] %v1998
    %2031 = vst [vmem:[#allocation2 + $0x14] sm:$0xf] %v1999
    %2032 = vst [vmem:[#allocation2 + $0x18] sm:$0xf] %v2000
    %2033 = vst [vmem:[#allocation2 + $0x1c] sm:$0xf] %v2001
    %2034 = vst [vmem:[#allocation2 + $0x20] sm:$0xf] %v2002
    %2035 = vst [vmem:[#allocation2 + $0x24] sm:$0xf] %v2003
    %2036 = vst [vmem:[#allocation2 + $0x28] sm:$0xf] %v2004
    %2037 = vst [vmem:[#allocation2 + $0x2c] sm:$0xf] %v2005
    %2038 = vst [vmem:[#allocation2 + $0x30] sm:$0xf] %v2006
    %2039 = vst [vmem:[#allocation2 + $0x34] sm:$0xf] %v2007
    %2040 = vst [vmem:[#allocation2 + $0x38] sm:$0xf] %v2008
    %2041 = vst [vmem:[#allocation2 + $0x3c] sm:$0x7] %v2009
    // Predicated region
    $region18: #{tpu_custom_call.1} parent=1 // pred_check
      _
    $region19: #{tpu_custom_call.1} parent=1 // pred_check_branch
      %2043 = sbr.rel (0) target = $region21
    $region20: #{tpu_custom_call.1} parent=1 // pred_region
      %s2045 = ssub.s32 1024, 1024
      %2046 = vsyncadd [#allocation3], %s2045
      %s2047 = sshll.u32 [#allocation2], 4
      %s2048 = int_to_ptr.vmem [resolvable:$true] %s2047
      %2053 = dma.vmem_to_hbm [thread:$0]  %s2048, 1024, %s4, [#allocation3], 64, 64, 4
    $region21: #{tpu_custom_call.1} parent=1 // pred_fallthru
      _
    // Predicated region
    $region22: #{tpu_custom_call.1} parent=1 // pred_check
      _
    $region23: #{tpu_custom_call.1} parent=1 // pred_check_branch
      %2055 = sbr.rel (0) target = $region25
    $region24: #{tpu_custom_call.1} parent=1 // pred_region
      %2056 = dma.done [#allocation3], 1024
    $region25: #{tpu_custom_call.1} parent=1 // pred_fallthru
      _
    %2057 = vsyncpa [#allocation3], 1

</llo_original>
